<compile_context>
chip_gen: v7x
topology: tpu7x:2x2x1
jax: 0.10.0
libtpu: 0.0.40
codegen_flags: <defaults>
</compile_context>

<pallas_src>
import functools

import jax
import jax.numpy as jnp
from jax.experimental import pallas as pl
from jax.experimental.pallas import tpu as pltpu

KSIZE = 7
PAD = 3
PADL = 128   # halo padding (lanes) on each side of the sa scratch


def _conv_tap_wmask(conv_w, H, W):
    """(1, C, 7, 7) conv weight -> (49, C, N) per-tap weight*validity masks.

    wm[t, c, n] = conv_w[0, c, kh, kw] if the tap (dh, dw) = (kh-3, kw-3) read
    at output position n stays inside the HxW image, else 0.
    """
    C = conv_w.shape[1]
    N = H * W
    idx = jnp.arange(N)
    hh = idx // W
    ww = idx % W
    taps = []
    for kh in range(KSIZE):
        for kw in range(KSIZE):
            dh = kh - PAD
            dw = kw - PAD
            valid = ((hh + dh >= 0) & (hh + dh < H)
                     & (ww + dw >= 0) & (ww + dw < W)).astype(jnp.float32)
            taps.append(conv_w[0, :, kh, kw].astype(jnp.float32)[:, None]
                        * valid[None, :])                       # (C, N)
    return jnp.stack(taps, axis=0)                              # (49, C, N)


def spatial_attention_kernel(x_ref, a_ref, pvw_ref, wm_ref, bias_ref,
                             o_ref, sa_ref, *, N, C, W, TQ, mxu_dtype):
    f32 = jnp.float32
    x_cn = x_ref[...]                                           # (C, N)
    xm = x_cn.astype(mxu_dtype)

    # Folded projections, one MXU push each:
    #   ka = (scale * Wq^T Wk) @ x   -> scores are x_tile^T @ ka
    #   pv = (Wp Wv) @ x             -> projected attn output is pv @ P^T
    ka = jnp.dot(a_ref[...].astype(mxu_dtype), xm,
                 preferred_element_type=f32).astype(mxu_dtype)  # (C, N)
    pv = jnp.dot(pvw_ref[...].astype(mxu_dtype), xm,
                 preferred_element_type=f32).astype(mxu_dtype)  # (C, N)

    # Zero only the halo pads of the sa scratch (body is fully overwritten).
    sa_ref[:, :PADL] = jnp.zeros((C, PADL), f32)
    sa_ref[:, PADL + N:] = jnp.zeros((C, PADL), f32)

    num_tiles = N // TQ

    def q_tile(t, carry):
        q0 = pl.multiple_of(t * TQ, TQ)
        x_t = x_ref[:, pl.ds(q0, TQ)].astype(mxu_dtype)         # (C, TQ)
        # score tile: contract the C axis of both operands -> (TQ, N)
        s = jax.lax.dot_general(x_t, ka, (((0,), (0,)), ((), ())),
                                preferred_element_type=f32)
        s = s - jnp.max(s, axis=-1, keepdims=True)
        p = jnp.exp(s)
        r = pl.reciprocal(jnp.sum(p, axis=-1, keepdims=True), approx=True)
        p = (p * r).astype(mxu_dtype)                           # (TQ, N)
        # projected attention output, channel-major: (C, TQ) = pv @ p^T
        sa_ref[:, pl.ds(PADL + q0, TQ)] = jax.lax.dot_general(
            pv, p, (((1,), (1,)), ((), ())), preferred_element_type=f32)
        return carry

    jax.lax.fori_loop(0, num_tiles, q_tile, 0, unroll=num_tiles <= 8)
    # TODO(synk): flash-style KV tiling for N >~ 2048 so the (TQ, N) score tile
    # stays bounded instead of shrinking TQ.

    # 7x7 conv (C -> 1): 49 shifted masked MACs on the lane-dense padded
    # scratch, then one sublane reduce over channels.  No dense Toeplitz.
    acc = jnp.zeros((C, N), f32)
    tap = 0
    for kh in range(KSIZE):
        for kw in range(KSIZE):
            d = (kh - PAD) * W + (kw - PAD)
            acc = acc + wm_ref[tap] * sa_ref[:, PADL + d:PADL + d + N]
            tap += 1
    conv = jnp.sum(acc, axis=0, keepdims=True) + bias_ref[...]  # (1, N)

    # sigmoid gate, broadcast over channels; lane-dense store.
    o_ref[...] = jax.nn.sigmoid(conv) * x_cn


def spatial_attention(x_nchw, params, num_heads=4, mxu_dtype=jnp.float32):
    B, C, H, W = x_nchw.shape
    N = H * W
    scale = float((C // num_heads) ** (-0.5))

    # Query tile: keep the live (TQ, N) f32 score tile at <= ~128 KiB.
    TQ = max(8, min(128, 32768 // max(N, 1)))
    while TQ > 1 and N % TQ:
        TQ //= 2
    if N % TQ:
        TQ = N

    x_bcn = x_nchw.reshape(B, C, N)                             # no transpose

    qkv_w = params["qkv_w"].astype(jnp.float32)                 # (3C, C): [Wq; Wk; Wv]
    wq, wk, wv = qkv_w[:C], qkv_w[C:2 * C], qkv_w[2 * C:]
    a_fold = scale * (wq.T @ wk)                                # (C, C)
    pv_w = params["proj_w"].astype(jnp.float32) @ wv            # (C, C)
    proj_b = params["proj_b"].astype(jnp.float32)               # (C,)
    wm = _conv_tap_wmask(params["conv_w"], H, W)                # (49, C, N)
    # conv is linear: fold proj bias and conv bias into one per-position map.
    bias_map = (jnp.einsum("c,tcn->n", proj_b, wm)
                + params["conv_b"].astype(jnp.float32)[0]).reshape(1, N)

    kernel = functools.partial(spatial_attention_kernel,
                               N=N, C=C, W=W, TQ=TQ, mxu_dtype=mxu_dtype)

    # Explicit VMEM budget (double-buffered blocks + scratch + live tiles).
    est_vmem = 4 * (2 * 2 * C * N            # x in + out, double-buffered
                    + 2 * 2 * C * C + 2 * N  # folded weights + bias map
                    + 2 * 49 * C * N         # conv tap weight/mask block
                    + C * (N + 2 * PADL)     # padded sa scratch
                    + 3 * TQ * N + 4 * C * N)  # live score/exp tiles, ka/pv
    vmem_limit = int(min(48 * 2 ** 20, max(8 * 2 ** 20, 2 * est_vmem)))

    out_bcn = pl.pallas_call(
        kernel,
        out_shape=jax.ShapeDtypeStruct((B, C, N), jnp.float32),
        grid_spec=pltpu.PrefetchScalarGridSpec(
            num_scalar_prefetch=0,
            grid=(B,),
            in_specs=[
                pl.BlockSpec((None, C, N), lambda b: (b, 0, 0)),   # x (per batch)
                pl.BlockSpec((C, C), lambda b: (0, 0)),            # scale*Wq^T Wk
                pl.BlockSpec((C, C), lambda b: (0, 0)),            # Wp Wv
                pl.BlockSpec((49, C, N), lambda b: (0, 0, 0)),     # conv tap w*mask
                pl.BlockSpec((1, N), lambda b: (0, 0)),            # folded bias map
            ],
            out_specs=pl.BlockSpec((None, C, N), lambda b: (b, 0, 0)),
            scratch_shapes=[
                pltpu.VMEM((C, N + 2 * PADL), jnp.float32),        # padded sa
            ],
        ),
        compiler_params=pltpu.CompilerParams(
            dimension_semantics=("parallel",),
            vmem_limit_bytes=vmem_limit),
    )(x_bcn, a_fold, pv_w, wm, bias_map)

    return out_bcn.reshape(B, C, H, W)


def reference(x_nchw, params, num_heads=4):
    """Pure-JAX reference mirroring the PyTorch forward."""
    B, C, H, W = x_nchw.shape
    N = H * W
    scale = (C // num_heads) ** (-0.5)
    xf = jnp.transpose(x_nchw.reshape(B, C, N), (0, 2, 1))      # (B, N, C)
    qkv = xf @ params["qkv_w"].T                                # (B, N, 3C)
    q, k, v = qkv[..., :C], qkv[..., C:2 * C], qkv[..., 2 * C:]
    attn = jax.nn.softmax((q @ jnp.swapaxes(k, -1, -2)) * scale, axis=-1)
    o = attn @ v
    o = o @ params["proj_w"].T + params["proj_b"]
    sa = jnp.transpose(o, (0, 2, 1)).reshape(B, C, H, W)        # NCHW
    conv = jax.lax.conv_general_dilated(
        sa, params["conv_w"], window_strides=(1, 1),
        padding=((PAD, PAD), (PAD, PAD)),
        dimension_numbers=("NCHW", "OIHW", "NCHW"))
    conv = conv + params["conv_b"][None, :, None, None]
    return jax.nn.sigmoid(conv) * x_nchw


if __name__ == "__main__":
    key = jax.random.PRNGKey(0)
    B, C, H, W = 2, 4, 16, 16
    keys = jax.random.split(key, 6)

    x = jax.random.normal(keys[0], (B, C, H, W), jnp.float32)

    # Parameters laid out like the PyTorch module:
    # nn.Linear(dim, 3*dim, bias=False).weight -> (3C, C), applied as x @ W.T.
    params = {
        "qkv_w": jax.random.normal(keys[1], (3 * C, C), jnp.float32) * 0.3,
        "proj_w": jax.random.normal(keys[2], (C, C), jnp.float32) * 0.3,
        "proj_b": jax.random.normal(keys[3], (C,), jnp.float32) * 0.1,
        "conv_w": jax.random.normal(keys[4], (1, C, KSIZE, KSIZE), jnp.float32) * 0.1,
        "conv_b": jax.random.normal(keys[5], (1,), jnp.float32) * 0.1,
    }

    out = spatial_attention(x, params)
    out = jax.block_until_ready(out)

    ref = reference(x, params)
    assert out.shape == x.shape, (out.shape, x.shape)
    max_err = float(jnp.max(jnp.abs(out - ref)))
    if max_err > 1e-2:
        raise AssertionError(f"kernel mismatch vs reference, max abs err = {max_err}")

    print("KERNEL_OK")
</pallas_src>

<mosaic_0001>
module attributes {stable_mosaic.version = 11 : i64} {
  func.func @spatial_attention_kernel(%arg0: i32, %arg1: memref<1x4x256xf32, #tpu.memory_space<vmem>>, %arg2: memref<4x4xf32, #tpu.memory_space<vmem>>, %arg3: memref<4x4xf32, #tpu.memory_space<vmem>>, %arg4: memref<49x4x256xf32, #tpu.memory_space<vmem>>, %arg5: memref<1x256xf32, #tpu.memory_space<vmem>>, %arg6: memref<1x4x256xf32, #tpu.memory_space<vmem>>, %arg7: memref<4x512xf32, #tpu.memory_space<vmem>>) attributes {dimension_semantics = [#tpu.dimension_semantics<parallel>], iteration_bounds = array<i64: 2>, scalar_prefetch = 0 : i64, scratch_operands = 1 : i64, tpu.core_type = #tpu.core_type<tc>, window_params = [{transform_indices = @transform_0, window_bounds = array<i64: 1, 4, 256>}, {pipeline_mode = #tpu.pipeline_mode<synchronous>, transform_indices = @transform_1, window_bounds = array<i64: 4, 4>}, {pipeline_mode = #tpu.pipeline_mode<synchronous>, transform_indices = @transform_2, window_bounds = array<i64: 4, 4>}, {pipeline_mode = #tpu.pipeline_mode<synchronous>, transform_indices = @transform_3, window_bounds = array<i64: 49, 4, 256>}, {pipeline_mode = #tpu.pipeline_mode<synchronous>, transform_indices = @transform_4, window_bounds = array<i64: 1, 256>}, {transform_indices = @transform_5, window_bounds = array<i64: 1, 4, 256>}]} {
    %c0 = arith.constant 0 : index
    %c0_0 = arith.constant 0 : index
    %c0_1 = arith.constant 0 : index
    %0 = vector.load %arg1[%c0, %c0_0, %c0_1] : memref<1x4x256xf32, #tpu.memory_space<vmem>>, vector<1x4x256xf32>
    %1 = vector.shape_cast %0 : vector<1x4x256xf32> to vector<4x256xf32>
    %c0_2 = arith.constant 0 : index
    %c0_3 = arith.constant 0 : index
    %2 = vector.load %arg2[%c0_2, %c0_3] : memref<4x4xf32, #tpu.memory_space<vmem>>, vector<4x4xf32>
    %cst = arith.constant dense<0.000000e+00> : vector<4x256xf32>
    %3 = tpu.matmul %2, %1, %cst {dimension_numbers = #tpu.dot_dimension_numbers<[1], [0], [0], [1], [0, 0, 1, 1], [], []>} : vector<4x4xf32>, vector<4x256xf32>, vector<4x256xf32> -> vector<4x256xf32>
    %c0_4 = arith.constant 0 : index
    %c0_5 = arith.constant 0 : index
    %4 = vector.load %arg3[%c0_4, %c0_5] : memref<4x4xf32, #tpu.memory_space<vmem>>, vector<4x4xf32>
    %cst_6 = arith.constant dense<0.000000e+00> : vector<4x256xf32>
    %5 = tpu.matmul %4, %1, %cst_6 {dimension_numbers = #tpu.dot_dimension_numbers<[1], [0], [0], [1], [0, 0, 1, 1], [], []>} : vector<4x4xf32>, vector<4x256xf32>, vector<4x256xf32> -> vector<4x256xf32>
    %cst_7 = arith.constant 0.000000e+00 : f32
    %6 = vector.broadcast %cst_7 : f32 to vector<4x128xf32>
    %c0_8 = arith.constant 0 : index
    %c0_9 = arith.constant 0 : index
    %7 = vector.load %arg7[%c0_8, %c0_9] : memref<4x512xf32, #tpu.memory_space<vmem>>, vector<4x128xf32>
    tpu.vector_store %arg7[%c0_8, %c0_9], %6 {strides = array<i32>} : memref<4x512xf32, #tpu.memory_space<vmem>>, vector<4x128xf32>,
    %cst_10 = arith.constant 0.000000e+00 : f32
    %8 = vector.broadcast %cst_10 : f32 to vector<4x128xf32>
    %c0_11 = arith.constant 0 : index
    %c384 = arith.constant 384 : index
    %9 = vector.load %arg7[%c0_11, %c384] : memref<4x512xf32, #tpu.memory_space<vmem>>, vector<4x128xf32>
    tpu.vector_store %arg7[%c0_11, %c384], %8 {strides = array<i32>} : memref<4x512xf32, #tpu.memory_space<vmem>>, vector<4x128xf32>,
    %c0_i32 = arith.constant 0 : i32
    %c128_i32 = arith.constant 128 : i32
    %10 = arith.muli %c0_i32, %c128_i32 : i32
    %11 = tpu.assume_multiple %10, 128 : i32
    %c0_12 = arith.constant 0 : index
    %c0_13 = arith.constant 0 : index
    %12 = arith.index_cast %11 : i32 to index
    %13 = vector.load %arg1[%c0_12, %c0_13, %12] : memref<1x4x256xf32, #tpu.memory_space<vmem>>, vector<1x4x128xf32>
    %14 = vector.shape_cast %13 : vector<1x4x128xf32> to vector<4x128xf32>
    %cst_14 = arith.constant dense<0.000000e+00> : vector<128x256xf32>
    %15 = tpu.matmul %14, %3, %cst_14 {dimension_numbers = #tpu.dot_dimension_numbers<[0], [0], [1], [1], [0, 1, 1, 1], [], []>} : vector<4x128xf32>, vector<4x256xf32>, vector<128x256xf32> -> vector<128x256xf32>
    %cst_15 = arith.constant dense<0xFF800000> : vector<128xf32>
    %16 = vector.multi_reduction <maximumf>, %15, %cst_15 [1] : vector<128x256xf32> to vector<128xf32>
    %17 = vector.shape_cast %16 : vector<128xf32> to vector<128x1xf32>
    %18 = vector.broadcast %17 : vector<128x1xf32> to vector<128x256xf32>
    %19 = arith.subf %15, %18 : vector<128x256xf32>
    %20 = math.exp %19 : vector<128x256xf32>
    %cst_16 = arith.constant dense<0.000000e+00> : vector<128xf32>
    %21 = vector.multi_reduction <add>, %20, %cst_16 [1] : vector<128x256xf32> to vector<128xf32>
    %22 = vector.shape_cast %21 : vector<128xf32> to vector<128x1xf32>
    %23 = tpu.reciprocal %22 {approx = true} : vector<128x1xf32> -> vector<128x1xf32>
    %24 = vector.broadcast %23 : vector<128x1xf32> to vector<128x256xf32>
    %25 = arith.mulf %20, %24 : vector<128x256xf32>
    %cst_17 = arith.constant dense<0.000000e+00> : vector<4x128xf32>
    %26 = tpu.matmul %5, %25, %cst_17 {dimension_numbers = #tpu.dot_dimension_numbers<[1], [1], [0], [0], [0, 0, 1, 0], [], []>} : vector<4x256xf32>, vector<128x256xf32>, vector<4x128xf32> -> vector<4x128xf32>
    %c128_i32_18 = arith.constant 128 : i32
    %27 = arith.addi %c128_i32_18, %11 : i32
    %c0_19 = arith.constant 0 : index
    %28 = arith.index_cast %27 : i32 to index
    %29 = vector.load %arg7[%c0_19, %28] : memref<4x512xf32, #tpu.memory_space<vmem>>, vector<4x128xf32>
    tpu.vector_store %arg7[%c0_19, %28], %26 {strides = array<i32>} : memref<4x512xf32, #tpu.memory_space<vmem>>, vector<4x128xf32>,
    %c1_i32 = arith.constant 1 : i32
    %c128_i32_20 = arith.constant 128 : i32
    %30 = arith.muli %c1_i32, %c128_i32_20 : i32
    %31 = tpu.assume_multiple %30, 128 : i32
    %c0_21 = arith.constant 0 : index
    %c0_22 = arith.constant 0 : index
    %32 = arith.index_cast %31 : i32 to index
    %33 = vector.load %arg1[%c0_21, %c0_22, %32] : memref<1x4x256xf32, #tpu.memory_space<vmem>>, vector<1x4x128xf32>
    %34 = vector.shape_cast %33 : vector<1x4x128xf32> to vector<4x128xf32>
    %cst_23 = arith.constant dense<0.000000e+00> : vector<128x256xf32>
    %35 = tpu.matmul %34, %3, %cst_23 {dimension_numbers = #tpu.dot_dimension_numbers<[0], [0], [1], [1], [0, 1, 1, 1], [], []>} : vector<4x128xf32>, vector<4x256xf32>, vector<128x256xf32> -> vector<128x256xf32>
    %cst_24 = arith.constant dense<0xFF800000> : vector<128xf32>
    %36 = vector.multi_reduction <maximumf>, %35, %cst_24 [1] : vector<128x256xf32> to vector<128xf32>
    %37 = vector.shape_cast %36 : vector<128xf32> to vector<128x1xf32>
    %38 = vector.broadcast %37 : vector<128x1xf32> to vector<128x256xf32>
    %39 = arith.subf %35, %38 : vector<128x256xf32>
    %40 = math.exp %39 : vector<128x256xf32>
    %cst_25 = arith.constant dense<0.000000e+00> : vector<128xf32>
    %41 = vector.multi_reduction <add>, %40, %cst_25 [1] : vector<128x256xf32> to vector<128xf32>
    %42 = vector.shape_cast %41 : vector<128xf32> to vector<128x1xf32>
    %43 = tpu.reciprocal %42 {approx = true} : vector<128x1xf32> -> vector<128x1xf32>
    %44 = vector.broadcast %43 : vector<128x1xf32> to vector<128x256xf32>
    %45 = arith.mulf %40, %44 : vector<128x256xf32>
    %cst_26 = arith.constant dense<0.000000e+00> : vector<4x128xf32>
    %46 = tpu.matmul %5, %45, %cst_26 {dimension_numbers = #tpu.dot_dimension_numbers<[1], [1], [0], [0], [0, 0, 1, 0], [], []>} : vector<4x256xf32>, vector<128x256xf32>, vector<4x128xf32> -> vector<4x128xf32>
    %c128_i32_27 = arith.constant 128 : i32
    %47 = arith.addi %c128_i32_27, %31 : i32
    %c0_28 = arith.constant 0 : index
    %48 = arith.index_cast %47 : i32 to index
    %49 = vector.load %arg7[%c0_28, %48] : memref<4x512xf32, #tpu.memory_space<vmem>>, vector<4x128xf32>
    tpu.vector_store %arg7[%c0_28, %48], %46 {strides = array<i32>} : memref<4x512xf32, #tpu.memory_space<vmem>>, vector<4x128xf32>,
    %c2_i32 = arith.constant 2 : i32
    %cst_29 = arith.constant 0.000000e+00 : f32
    %50 = vector.broadcast %cst_29 : f32 to vector<4x256xf32>
    %c0_30 = arith.constant 0 : index
    %c0_31 = arith.constant 0 : index
    %c0_32 = arith.constant 0 : index
    %51 = vector.load %arg4[%c0_30, %c0_31, %c0_32] : memref<49x4x256xf32, #tpu.memory_space<vmem>>, vector<1x4x256xf32>
    %52 = vector.shape_cast %51 : vector<1x4x256xf32> to vector<4x256xf32>
    %c0_33 = arith.constant 0 : index
    %c77 = arith.constant 77 : index
    %53 = vector.load %arg7[%c0_33, %c77] : memref<4x512xf32, #tpu.memory_space<vmem>>, vector<4x256xf32>
    %54 = arith.mulf %52, %53 : vector<4x256xf32>
    %55 = arith.addf %50, %54 : vector<4x256xf32>
    %c1 = arith.constant 1 : index
    %c0_34 = arith.constant 0 : index
    %c0_35 = arith.constant 0 : index
    %56 = vector.load %arg4[%c1, %c0_34, %c0_35] : memref<49x4x256xf32, #tpu.memory_space<vmem>>, vector<1x4x256xf32>
    %57 = vector.shape_cast %56 : vector<1x4x256xf32> to vector<4x256xf32>
    %c0_36 = arith.constant 0 : index
    %c78 = arith.constant 78 : index
    %58 = vector.load %arg7[%c0_36, %c78] : memref<4x512xf32, #tpu.memory_space<vmem>>, vector<4x256xf32>
    %59 = arith.mulf %57, %58 : vector<4x256xf32>
    %60 = arith.addf %55, %59 : vector<4x256xf32>
    %c2 = arith.constant 2 : index
    %c0_37 = arith.constant 0 : index
    %c0_38 = arith.constant 0 : index
    %61 = vector.load %arg4[%c2, %c0_37, %c0_38] : memref<49x4x256xf32, #tpu.memory_space<vmem>>, vector<1x4x256xf32>
    %62 = vector.shape_cast %61 : vector<1x4x256xf32> to vector<4x256xf32>
    %c0_39 = arith.constant 0 : index
    %c79 = arith.constant 79 : index
    %63 = vector.load %arg7[%c0_39, %c79] : memref<4x512xf32, #tpu.memory_space<vmem>>, vector<4x256xf32>
    %64 = arith.mulf %62, %63 : vector<4x256xf32>
    %65 = arith.addf %60, %64 : vector<4x256xf32>
    %c3 = arith.constant 3 : index
    %c0_40 = arith.constant 0 : index
    %c0_41 = arith.constant 0 : index
    %66 = vector.load %arg4[%c3, %c0_40, %c0_41] : memref<49x4x256xf32, #tpu.memory_space<vmem>>, vector<1x4x256xf32>
    %67 = vector.shape_cast %66 : vector<1x4x256xf32> to vector<4x256xf32>
    %c0_42 = arith.constant 0 : index
    %c80 = arith.constant 80 : index
    %68 = vector.load %arg7[%c0_42, %c80] : memref<4x512xf32, #tpu.memory_space<vmem>>, vector<4x256xf32>
    %69 = arith.mulf %67, %68 : vector<4x256xf32>
    %70 = arith.addf %65, %69 : vector<4x256xf32>
    %c4 = arith.constant 4 : index
    %c0_43 = arith.constant 0 : index
    %c0_44 = arith.constant 0 : index
    %71 = vector.load %arg4[%c4, %c0_43, %c0_44] : memref<49x4x256xf32, #tpu.memory_space<vmem>>, vector<1x4x256xf32>
    %72 = vector.shape_cast %71 : vector<1x4x256xf32> to vector<4x256xf32>
    %c0_45 = arith.constant 0 : index
    %c81 = arith.constant 81 : index
    %73 = vector.load %arg7[%c0_45, %c81] : memref<4x512xf32, #tpu.memory_space<vmem>>, vector<4x256xf32>
    %74 = arith.mulf %72, %73 : vector<4x256xf32>
    %75 = arith.addf %70, %74 : vector<4x256xf32>
    %c5 = arith.constant 5 : index
    %c0_46 = arith.constant 0 : index
    %c0_47 = arith.constant 0 : index
    %76 = vector.load %arg4[%c5, %c0_46, %c0_47] : memref<49x4x256xf32, #tpu.memory_space<vmem>>, vector<1x4x256xf32>
    %77 = vector.shape_cast %76 : vector<1x4x256xf32> to vector<4x256xf32>
    %c0_48 = arith.constant 0 : index
    %c82 = arith.constant 82 : index
    %78 = vector.load %arg7[%c0_48, %c82] : memref<4x512xf32, #tpu.memory_space<vmem>>, vector<4x256xf32>
    %79 = arith.mulf %77, %78 : vector<4x256xf32>
    %80 = arith.addf %75, %79 : vector<4x256xf32>
    %c6 = arith.constant 6 : index
    %c0_49 = arith.constant 0 : index
    %c0_50 = arith.constant 0 : index
    %81 = vector.load %arg4[%c6, %c0_49, %c0_50] : memref<49x4x256xf32, #tpu.memory_space<vmem>>, vector<1x4x256xf32>
    %82 = vector.shape_cast %81 : vector<1x4x256xf32> to vector<4x256xf32>
    %c0_51 = arith.constant 0 : index
    %c83 = arith.constant 83 : index
    %83 = vector.load %arg7[%c0_51, %c83] : memref<4x512xf32, #tpu.memory_space<vmem>>, vector<4x256xf32>
    %84 = arith.mulf %82, %83 : vector<4x256xf32>
    %85 = arith.addf %80, %84 : vector<4x256xf32>
    %c7 = arith.constant 7 : index
    %c0_52 = arith.constant 0 : index
    %c0_53 = arith.constant 0 : index
    %86 = vector.load %arg4[%c7, %c0_52, %c0_53] : memref<49x4x256xf32, #tpu.memory_space<vmem>>, vector<1x4x256xf32>
    %87 = vector.shape_cast %86 : vector<1x4x256xf32> to vector<4x256xf32>
    %c0_54 = arith.constant 0 : index
    %c93 = arith.constant 93 : index
    %88 = vector.load %arg7[%c0_54, %c93] : memref<4x512xf32, #tpu.memory_space<vmem>>, vector<4x256xf32>
    %89 = arith.mulf %87, %88 : vector<4x256xf32>
    %90 = arith.addf %85, %89 : vector<4x256xf32>
    %c8 = arith.constant 8 : index
    %c0_55 = arith.constant 0 : index
    %c0_56 = arith.constant 0 : index
    %91 = vector.load %arg4[%c8, %c0_55, %c0_56] : memref<49x4x256xf32, #tpu.memory_space<vmem>>, vector<1x4x256xf32>
    %92 = vector.shape_cast %91 : vector<1x4x256xf32> to vector<4x256xf32>
    %c0_57 = arith.constant 0 : index
    %c94 = arith.constant 94 : index
    %93 = vector.load %arg7[%c0_57, %c94] : memref<4x512xf32, #tpu.memory_space<vmem>>, vector<4x256xf32>
    %94 = arith.mulf %92, %93 : vector<4x256xf32>
    %95 = arith.addf %90, %94 : vector<4x256xf32>
    %c9 = arith.constant 9 : index
    %c0_58 = arith.constant 0 : index
    %c0_59 = arith.constant 0 : index
    %96 = vector.load %arg4[%c9, %c0_58, %c0_59] : memref<49x4x256xf32, #tpu.memory_space<vmem>>, vector<1x4x256xf32>
    %97 = vector.shape_cast %96 : vector<1x4x256xf32> to vector<4x256xf32>
    %c0_60 = arith.constant 0 : index
    %c95 = arith.constant 95 : index
    %98 = vector.load %arg7[%c0_60, %c95] : memref<4x512xf32, #tpu.memory_space<vmem>>, vector<4x256xf32>
    %99 = arith.mulf %97, %98 : vector<4x256xf32>
    %100 = arith.addf %95, %99 : vector<4x256xf32>
    %c10 = arith.constant 10 : index
    %c0_61 = arith.constant 0 : index
    %c0_62 = arith.constant 0 : index
    %101 = vector.load %arg4[%c10, %c0_61, %c0_62] : memref<49x4x256xf32, #tpu.memory_space<vmem>>, vector<1x4x256xf32>
    %102 = vector.shape_cast %101 : vector<1x4x256xf32> to vector<4x256xf32>
    %c0_63 = arith.constant 0 : index
    %c96 = arith.constant 96 : index
    %103 = vector.load %arg7[%c0_63, %c96] : memref<4x512xf32, #tpu.memory_space<vmem>>, vector<4x256xf32>
    %104 = arith.mulf %102, %103 : vector<4x256xf32>
    %105 = arith.addf %100, %104 : vector<4x256xf32>
    %c11 = arith.constant 11 : index
    %c0_64 = arith.constant 0 : index
    %c0_65 = arith.constant 0 : index
    %106 = vector.load %arg4[%c11, %c0_64, %c0_65] : memref<49x4x256xf32, #tpu.memory_space<vmem>>, vector<1x4x256xf32>
    %107 = vector.shape_cast %106 : vector<1x4x256xf32> to vector<4x256xf32>
    %c0_66 = arith.constant 0 : index
    %c97 = arith.constant 97 : index
    %108 = vector.load %arg7[%c0_66, %c97] : memref<4x512xf32, #tpu.memory_space<vmem>>, vector<4x256xf32>
    %109 = arith.mulf %107, %108 : vector<4x256xf32>
    %110 = arith.addf %105, %109 : vector<4x256xf32>
    %c12 = arith.constant 12 : index
    %c0_67 = arith.constant 0 : index
    %c0_68 = arith.constant 0 : index
    %111 = vector.load %arg4[%c12, %c0_67, %c0_68] : memref<49x4x256xf32, #tpu.memory_space<vmem>>, vector<1x4x256xf32>
    %112 = vector.shape_cast %111 : vector<1x4x256xf32> to vector<4x256xf32>
    %c0_69 = arith.constant 0 : index
    %c98 = arith.constant 98 : index
    %113 = vector.load %arg7[%c0_69, %c98] : memref<4x512xf32, #tpu.memory_space<vmem>>, vector<4x256xf32>
    %114 = arith.mulf %112, %113 : vector<4x256xf32>
    %115 = arith.addf %110, %114 : vector<4x256xf32>
    %c13 = arith.constant 13 : index
    %c0_70 = arith.constant 0 : index
    %c0_71 = arith.constant 0 : index
    %116 = vector.load %arg4[%c13, %c0_70, %c0_71] : memref<49x4x256xf32, #tpu.memory_space<vmem>>, vector<1x4x256xf32>
    %117 = vector.shape_cast %116 : vector<1x4x256xf32> to vector<4x256xf32>
    %c0_72 = arith.constant 0 : index
    %c99 = arith.constant 99 : index
    %118 = vector.load %arg7[%c0_72, %c99] : memref<4x512xf32, #tpu.memory_space<vmem>>, vector<4x256xf32>
    %119 = arith.mulf %117, %118 : vector<4x256xf32>
    %120 = arith.addf %115, %119 : vector<4x256xf32>
    %c14 = arith.constant 14 : index
    %c0_73 = arith.constant 0 : index
    %c0_74 = arith.constant 0 : index
    %121 = vector.load %arg4[%c14, %c0_73, %c0_74] : memref<49x4x256xf32, #tpu.memory_space<vmem>>, vector<1x4x256xf32>
    %122 = vector.shape_cast %121 : vector<1x4x256xf32> to vector<4x256xf32>
    %c0_75 = arith.constant 0 : index
    %c109 = arith.constant 109 : index
    %123 = vector.load %arg7[%c0_75, %c109] : memref<4x512xf32, #tpu.memory_space<vmem>>, vector<4x256xf32>
    %124 = arith.mulf %122, %123 : vector<4x256xf32>
    %125 = arith.addf %120, %124 : vector<4x256xf32>
    %c15 = arith.constant 15 : index
    %c0_76 = arith.constant 0 : index
    %c0_77 = arith.constant 0 : index
    %126 = vector.load %arg4[%c15, %c0_76, %c0_77] : memref<49x4x256xf32, #tpu.memory_space<vmem>>, vector<1x4x256xf32>
    %127 = vector.shape_cast %126 : vector<1x4x256xf32> to vector<4x256xf32>
    %c0_78 = arith.constant 0 : index
    %c110 = arith.constant 110 : index
    %128 = vector.load %arg7[%c0_78, %c110] : memref<4x512xf32, #tpu.memory_space<vmem>>, vector<4x256xf32>
    %129 = arith.mulf %127, %128 : vector<4x256xf32>
    %130 = arith.addf %125, %129 : vector<4x256xf32>
    %c16 = arith.constant 16 : index
    %c0_79 = arith.constant 0 : index
    %c0_80 = arith.constant 0 : index
    %131 = vector.load %arg4[%c16, %c0_79, %c0_80] : memref<49x4x256xf32, #tpu.memory_space<vmem>>, vector<1x4x256xf32>
    %132 = vector.shape_cast %131 : vector<1x4x256xf32> to vector<4x256xf32>
    %c0_81 = arith.constant 0 : index
    %c111 = arith.constant 111 : index
    %133 = vector.load %arg7[%c0_81, %c111] : memref<4x512xf32, #tpu.memory_space<vmem>>, vector<4x256xf32>
    %134 = arith.mulf %132, %133 : vector<4x256xf32>
    %135 = arith.addf %130, %134 : vector<4x256xf32>
    %c17 = arith.constant 17 : index
    %c0_82 = arith.constant 0 : index
    %c0_83 = arith.constant 0 : index
    %136 = vector.load %arg4[%c17, %c0_82, %c0_83] : memref<49x4x256xf32, #tpu.memory_space<vmem>>, vector<1x4x256xf32>
    %137 = vector.shape_cast %136 : vector<1x4x256xf32> to vector<4x256xf32>
    %c0_84 = arith.constant 0 : index
    %c112 = arith.constant 112 : index
    %138 = vector.load %arg7[%c0_84, %c112] : memref<4x512xf32, #tpu.memory_space<vmem>>, vector<4x256xf32>
    %139 = arith.mulf %137, %138 : vector<4x256xf32>
    %140 = arith.addf %135, %139 : vector<4x256xf32>
    %c18 = arith.constant 18 : index
    %c0_85 = arith.constant 0 : index
    %c0_86 = arith.constant 0 : index
    %141 = vector.load %arg4[%c18, %c0_85, %c0_86] : memref<49x4x256xf32, #tpu.memory_space<vmem>>, vector<1x4x256xf32>
    %142 = vector.shape_cast %141 : vector<1x4x256xf32> to vector<4x256xf32>
    %c0_87 = arith.constant 0 : index
    %c113 = arith.constant 113 : index
    %143 = vector.load %arg7[%c0_87, %c113] : memref<4x512xf32, #tpu.memory_space<vmem>>, vector<4x256xf32>
    %144 = arith.mulf %142, %143 : vector<4x256xf32>
    %145 = arith.addf %140, %144 : vector<4x256xf32>
    %c19 = arith.constant 19 : index
    %c0_88 = arith.constant 0 : index
    %c0_89 = arith.constant 0 : index
    %146 = vector.load %arg4[%c19, %c0_88, %c0_89] : memref<49x4x256xf32, #tpu.memory_space<vmem>>, vector<1x4x256xf32>
    %147 = vector.shape_cast %146 : vector<1x4x256xf32> to vector<4x256xf32>
    %c0_90 = arith.constant 0 : index
    %c114 = arith.constant 114 : index
    %148 = vector.load %arg7[%c0_90, %c114] : memref<4x512xf32, #tpu.memory_space<vmem>>, vector<4x256xf32>
    %149 = arith.mulf %147, %148 : vector<4x256xf32>
    %150 = arith.addf %145, %149 : vector<4x256xf32>
    %c20 = arith.constant 20 : index
    %c0_91 = arith.constant 0 : index
    %c0_92 = arith.constant 0 : index
    %151 = vector.load %arg4[%c20, %c0_91, %c0_92] : memref<49x4x256xf32, #tpu.memory_space<vmem>>, vector<1x4x256xf32>
    %152 = vector.shape_cast %151 : vector<1x4x256xf32> to vector<4x256xf32>
    %c0_93 = arith.constant 0 : index
    %c115 = arith.constant 115 : index
    %153 = vector.load %arg7[%c0_93, %c115] : memref<4x512xf32, #tpu.memory_space<vmem>>, vector<4x256xf32>
    %154 = arith.mulf %152, %153 : vector<4x256xf32>
    %155 = arith.addf %150, %154 : vector<4x256xf32>
    %c21 = arith.constant 21 : index
    %c0_94 = arith.constant 0 : index
    %c0_95 = arith.constant 0 : index
    %156 = vector.load %arg4[%c21, %c0_94, %c0_95] : memref<49x4x256xf32, #tpu.memory_space<vmem>>, vector<1x4x256xf32>
    %157 = vector.shape_cast %156 : vector<1x4x256xf32> to vector<4x256xf32>
    %c0_96 = arith.constant 0 : index
    %c125 = arith.constant 125 : index
    %158 = vector.load %arg7[%c0_96, %c125] : memref<4x512xf32, #tpu.memory_space<vmem>>, vector<4x256xf32>
    %159 = arith.mulf %157, %158 : vector<4x256xf32>
    %160 = arith.addf %155, %159 : vector<4x256xf32>
    %c22 = arith.constant 22 : index
    %c0_97 = arith.constant 0 : index
    %c0_98 = arith.constant 0 : index
    %161 = vector.load %arg4[%c22, %c0_97, %c0_98] : memref<49x4x256xf32, #tpu.memory_space<vmem>>, vector<1x4x256xf32>
    %162 = vector.shape_cast %161 : vector<1x4x256xf32> to vector<4x256xf32>
    %c0_99 = arith.constant 0 : index
    %c126 = arith.constant 126 : index
    %163 = vector.load %arg7[%c0_99, %c126] : memref<4x512xf32, #tpu.memory_space<vmem>>, vector<4x256xf32>
    %164 = arith.mulf %162, %163 : vector<4x256xf32>
    %165 = arith.addf %160, %164 : vector<4x256xf32>
    %c23 = arith.constant 23 : index
    %c0_100 = arith.constant 0 : index
    %c0_101 = arith.constant 0 : index
    %166 = vector.load %arg4[%c23, %c0_100, %c0_101] : memref<49x4x256xf32, #tpu.memory_space<vmem>>, vector<1x4x256xf32>
    %167 = vector.shape_cast %166 : vector<1x4x256xf32> to vector<4x256xf32>
    %c0_102 = arith.constant 0 : index
    %c127 = arith.constant 127 : index
    %168 = vector.load %arg7[%c0_102, %c127] : memref<4x512xf32, #tpu.memory_space<vmem>>, vector<4x256xf32>
    %169 = arith.mulf %167, %168 : vector<4x256xf32>
    %170 = arith.addf %165, %169 : vector<4x256xf32>
    %c24 = arith.constant 24 : index
    %c0_103 = arith.constant 0 : index
    %c0_104 = arith.constant 0 : index
    %171 = vector.load %arg4[%c24, %c0_103, %c0_104] : memref<49x4x256xf32, #tpu.memory_space<vmem>>, vector<1x4x256xf32>
    %172 = vector.shape_cast %171 : vector<1x4x256xf32> to vector<4x256xf32>
    %c0_105 = arith.constant 0 : index
    %c128 = arith.constant 128 : index
    %173 = vector.load %arg7[%c0_105, %c128] : memref<4x512xf32, #tpu.memory_space<vmem>>, vector<4x256xf32>
    %174 = arith.mulf %172, %173 : vector<4x256xf32>
    %175 = arith.addf %170, %174 : vector<4x256xf32>
    %c25 = arith.constant 25 : index
    %c0_106 = arith.constant 0 : index
    %c0_107 = arith.constant 0 : index
    %176 = vector.load %arg4[%c25, %c0_106, %c0_107] : memref<49x4x256xf32, #tpu.memory_space<vmem>>, vector<1x4x256xf32>
    %177 = vector.shape_cast %176 : vector<1x4x256xf32> to vector<4x256xf32>
    %c0_108 = arith.constant 0 : index
    %c129 = arith.constant 129 : index
    %178 = vector.load %arg7[%c0_108, %c129] : memref<4x512xf32, #tpu.memory_space<vmem>>, vector<4x256xf32>
    %179 = arith.mulf %177, %178 : vector<4x256xf32>
    %180 = arith.addf %175, %179 : vector<4x256xf32>
    %c26 = arith.constant 26 : index
    %c0_109 = arith.constant 0 : index
    %c0_110 = arith.constant 0 : index
    %181 = vector.load %arg4[%c26, %c0_109, %c0_110] : memref<49x4x256xf32, #tpu.memory_space<vmem>>, vector<1x4x256xf32>
    %182 = vector.shape_cast %181 : vector<1x4x256xf32> to vector<4x256xf32>
    %c0_111 = arith.constant 0 : index
    %c130 = arith.constant 130 : index
    %183 = vector.load %arg7[%c0_111, %c130] : memref<4x512xf32, #tpu.memory_space<vmem>>, vector<4x256xf32>
    %184 = arith.mulf %182, %183 : vector<4x256xf32>
    %185 = arith.addf %180, %184 : vector<4x256xf32>
    %c27 = arith.constant 27 : index
    %c0_112 = arith.constant 0 : index
    %c0_113 = arith.constant 0 : index
    %186 = vector.load %arg4[%c27, %c0_112, %c0_113] : memref<49x4x256xf32, #tpu.memory_space<vmem>>, vector<1x4x256xf32>
    %187 = vector.shape_cast %186 : vector<1x4x256xf32> to vector<4x256xf32>
    %c0_114 = arith.constant 0 : index
    %c131 = arith.constant 131 : index
    %188 = vector.load %arg7[%c0_114, %c131] : memref<4x512xf32, #tpu.memory_space<vmem>>, vector<4x256xf32>
    %189 = arith.mulf %187, %188 : vector<4x256xf32>
    %190 = arith.addf %185, %189 : vector<4x256xf32>
    %c28 = arith.constant 28 : index
    %c0_115 = arith.constant 0 : index
    %c0_116 = arith.constant 0 : index
    %191 = vector.load %arg4[%c28, %c0_115, %c0_116] : memref<49x4x256xf32, #tpu.memory_space<vmem>>, vector<1x4x256xf32>
    %192 = vector.shape_cast %191 : vector<1x4x256xf32> to vector<4x256xf32>
    %c0_117 = arith.constant 0 : index
    %c141 = arith.constant 141 : index
    %193 = vector.load %arg7[%c0_117, %c141] : memref<4x512xf32, #tpu.memory_space<vmem>>, vector<4x256xf32>
    %194 = arith.mulf %192, %193 : vector<4x256xf32>
    %195 = arith.addf %190, %194 : vector<4x256xf32>
    %c29 = arith.constant 29 : index
    %c0_118 = arith.constant 0 : index
    %c0_119 = arith.constant 0 : index
    %196 = vector.load %arg4[%c29, %c0_118, %c0_119] : memref<49x4x256xf32, #tpu.memory_space<vmem>>, vector<1x4x256xf32>
    %197 = vector.shape_cast %196 : vector<1x4x256xf32> to vector<4x256xf32>
    %c0_120 = arith.constant 0 : index
    %c142 = arith.constant 142 : index
    %198 = vector.load %arg7[%c0_120, %c142] : memref<4x512xf32, #tpu.memory_space<vmem>>, vector<4x256xf32>
    %199 = arith.mulf %197, %198 : vector<4x256xf32>
    %200 = arith.addf %195, %199 : vector<4x256xf32>
    %c30 = arith.constant 30 : index
    %c0_121 = arith.constant 0 : index
    %c0_122 = arith.constant 0 : index
    %201 = vector.load %arg4[%c30, %c0_121, %c0_122] : memref<49x4x256xf32, #tpu.memory_space<vmem>>, vector<1x4x256xf32>
    %202 = vector.shape_cast %201 : vector<1x4x256xf32> to vector<4x256xf32>
    %c0_123 = arith.constant 0 : index
    %c143 = arith.constant 143 : index
    %203 = vector.load %arg7[%c0_123, %c143] : memref<4x512xf32, #tpu.memory_space<vmem>>, vector<4x256xf32>
    %204 = arith.mulf %202, %203 : vector<4x256xf32>
    %205 = arith.addf %200, %204 : vector<4x256xf32>
    %c31 = arith.constant 31 : index
    %c0_124 = arith.constant 0 : index
    %c0_125 = arith.constant 0 : index
    %206 = vector.load %arg4[%c31, %c0_124, %c0_125] : memref<49x4x256xf32, #tpu.memory_space<vmem>>, vector<1x4x256xf32>
    %207 = vector.shape_cast %206 : vector<1x4x256xf32> to vector<4x256xf32>
    %c0_126 = arith.constant 0 : index
    %c144 = arith.constant 144 : index
    %208 = vector.load %arg7[%c0_126, %c144] : memref<4x512xf32, #tpu.memory_space<vmem>>, vector<4x256xf32>
    %209 = arith.mulf %207, %208 : vector<4x256xf32>
    %210 = arith.addf %205, %209 : vector<4x256xf32>
    %c32 = arith.constant 32 : index
    %c0_127 = arith.constant 0 : index
    %c0_128 = arith.constant 0 : index
    %211 = vector.load %arg4[%c32, %c0_127, %c0_128] : memref<49x4x256xf32, #tpu.memory_space<vmem>>, vector<1x4x256xf32>
    %212 = vector.shape_cast %211 : vector<1x4x256xf32> to vector<4x256xf32>
    %c0_129 = arith.constant 0 : index
    %c145 = arith.constant 145 : index
    %213 = vector.load %arg7[%c0_129, %c145] : memref<4x512xf32, #tpu.memory_space<vmem>>, vector<4x256xf32>
    %214 = arith.mulf %212, %213 : vector<4x256xf32>
    %215 = arith.addf %210, %214 : vector<4x256xf32>
    %c33 = arith.constant 33 : index
    %c0_130 = arith.constant 0 : index
    %c0_131 = arith.constant 0 : index
    %216 = vector.load %arg4[%c33, %c0_130, %c0_131] : memref<49x4x256xf32, #tpu.memory_space<vmem>>, vector<1x4x256xf32>
    %217 = vector.shape_cast %216 : vector<1x4x256xf32> to vector<4x256xf32>
    %c0_132 = arith.constant 0 : index
    %c146 = arith.constant 146 : index
    %218 = vector.load %arg7[%c0_132, %c146] : memref<4x512xf32, #tpu.memory_space<vmem>>, vector<4x256xf32>
    %219 = arith.mulf %217, %218 : vector<4x256xf32>
    %220 = arith.addf %215, %219 : vector<4x256xf32>
    %c34 = arith.constant 34 : index
    %c0_133 = arith.constant 0 : index
    %c0_134 = arith.constant 0 : index
    %221 = vector.load %arg4[%c34, %c0_133, %c0_134] : memref<49x4x256xf32, #tpu.memory_space<vmem>>, vector<1x4x256xf32>
    %222 = vector.shape_cast %221 : vector<1x4x256xf32> to vector<4x256xf32>
    %c0_135 = arith.constant 0 : index
    %c147 = arith.constant 147 : index
    %223 = vector.load %arg7[%c0_135, %c147] : memref<4x512xf32, #tpu.memory_space<vmem>>, vector<4x256xf32>
    %224 = arith.mulf %222, %223 : vector<4x256xf32>
    %225 = arith.addf %220, %224 : vector<4x256xf32>
    %c35 = arith.constant 35 : index
    %c0_136 = arith.constant 0 : index
    %c0_137 = arith.constant 0 : index
    %226 = vector.load %arg4[%c35, %c0_136, %c0_137] : memref<49x4x256xf32, #tpu.memory_space<vmem>>, vector<1x4x256xf32>
    %227 = vector.shape_cast %226 : vector<1x4x256xf32> to vector<4x256xf32>
    %c0_138 = arith.constant 0 : index
    %c157 = arith.constant 157 : index
    %228 = vector.load %arg7[%c0_138, %c157] : memref<4x512xf32, #tpu.memory_space<vmem>>, vector<4x256xf32>
    %229 = arith.mulf %227, %228 : vector<4x256xf32>
    %230 = arith.addf %225, %229 : vector<4x256xf32>
    %c36 = arith.constant 36 : index
    %c0_139 = arith.constant 0 : index
    %c0_140 = arith.constant 0 : index
    %231 = vector.load %arg4[%c36, %c0_139, %c0_140] : memref<49x4x256xf32, #tpu.memory_space<vmem>>, vector<1x4x256xf32>
    %232 = vector.shape_cast %231 : vector<1x4x256xf32> to vector<4x256xf32>
    %c0_141 = arith.constant 0 : index
    %c158 = arith.constant 158 : index
    %233 = vector.load %arg7[%c0_141, %c158] : memref<4x512xf32, #tpu.memory_space<vmem>>, vector<4x256xf32>
    %234 = arith.mulf %232, %233 : vector<4x256xf32>
    %235 = arith.addf %230, %234 : vector<4x256xf32>
    %c37 = arith.constant 37 : index
    %c0_142 = arith.constant 0 : index
    %c0_143 = arith.constant 0 : index
    %236 = vector.load %arg4[%c37, %c0_142, %c0_143] : memref<49x4x256xf32, #tpu.memory_space<vmem>>, vector<1x4x256xf32>
    %237 = vector.shape_cast %236 : vector<1x4x256xf32> to vector<4x256xf32>
    %c0_144 = arith.constant 0 : index
    %c159 = arith.constant 159 : index
    %238 = vector.load %arg7[%c0_144, %c159] : memref<4x512xf32, #tpu.memory_space<vmem>>, vector<4x256xf32>
    %239 = arith.mulf %237, %238 : vector<4x256xf32>
    %240 = arith.addf %235, %239 : vector<4x256xf32>
    %c38 = arith.constant 38 : index
    %c0_145 = arith.constant 0 : index
    %c0_146 = arith.constant 0 : index
    %241 = vector.load %arg4[%c38, %c0_145, %c0_146] : memref<49x4x256xf32, #tpu.memory_space<vmem>>, vector<1x4x256xf32>
    %242 = vector.shape_cast %241 : vector<1x4x256xf32> to vector<4x256xf32>
    %c0_147 = arith.constant 0 : index
    %c160 = arith.constant 160 : index
    %243 = vector.load %arg7[%c0_147, %c160] : memref<4x512xf32, #tpu.memory_space<vmem>>, vector<4x256xf32>
    %244 = arith.mulf %242, %243 : vector<4x256xf32>
    %245 = arith.addf %240, %244 : vector<4x256xf32>
    %c39 = arith.constant 39 : index
    %c0_148 = arith.constant 0 : index
    %c0_149 = arith.constant 0 : index
    %246 = vector.load %arg4[%c39, %c0_148, %c0_149] : memref<49x4x256xf32, #tpu.memory_space<vmem>>, vector<1x4x256xf32>
    %247 = vector.shape_cast %246 : vector<1x4x256xf32> to vector<4x256xf32>
    %c0_150 = arith.constant 0 : index
    %c161 = arith.constant 161 : index
    %248 = vector.load %arg7[%c0_150, %c161] : memref<4x512xf32, #tpu.memory_space<vmem>>, vector<4x256xf32>
    %249 = arith.mulf %247, %248 : vector<4x256xf32>
    %250 = arith.addf %245, %249 : vector<4x256xf32>
    %c40 = arith.constant 40 : index
    %c0_151 = arith.constant 0 : index
    %c0_152 = arith.constant 0 : index
    %251 = vector.load %arg4[%c40, %c0_151, %c0_152] : memref<49x4x256xf32, #tpu.memory_space<vmem>>, vector<1x4x256xf32>
    %252 = vector.shape_cast %251 : vector<1x4x256xf32> to vector<4x256xf32>
    %c0_153 = arith.constant 0 : index
    %c162 = arith.constant 162 : index
    %253 = vector.load %arg7[%c0_153, %c162] : memref<4x512xf32, #tpu.memory_space<vmem>>, vector<4x256xf32>
    %254 = arith.mulf %252, %253 : vector<4x256xf32>
    %255 = arith.addf %250, %254 : vector<4x256xf32>
    %c41 = arith.constant 41 : index
    %c0_154 = arith.constant 0 : index
    %c0_155 = arith.constant 0 : index
    %256 = vector.load %arg4[%c41, %c0_154, %c0_155] : memref<49x4x256xf32, #tpu.memory_space<vmem>>, vector<1x4x256xf32>
    %257 = vector.shape_cast %256 : vector<1x4x256xf32> to vector<4x256xf32>
    %c0_156 = arith.constant 0 : index
    %c163 = arith.constant 163 : index
    %258 = vector.load %arg7[%c0_156, %c163] : memref<4x512xf32, #tpu.memory_space<vmem>>, vector<4x256xf32>
    %259 = arith.mulf %257, %258 : vector<4x256xf32>
    %260 = arith.addf %255, %259 : vector<4x256xf32>
    %c42 = arith.constant 42 : index
    %c0_157 = arith.constant 0 : index
    %c0_158 = arith.constant 0 : index
    %261 = vector.load %arg4[%c42, %c0_157, %c0_158] : memref<49x4x256xf32, #tpu.memory_space<vmem>>, vector<1x4x256xf32>
    %262 = vector.shape_cast %261 : vector<1x4x256xf32> to vector<4x256xf32>
    %c0_159 = arith.constant 0 : index
    %c173 = arith.constant 173 : index
    %263 = vector.load %arg7[%c0_159, %c173] : memref<4x512xf32, #tpu.memory_space<vmem>>, vector<4x256xf32>
    %264 = arith.mulf %262, %263 : vector<4x256xf32>
    %265 = arith.addf %260, %264 : vector<4x256xf32>
    %c43 = arith.constant 43 : index
    %c0_160 = arith.constant 0 : index
    %c0_161 = arith.constant 0 : index
    %266 = vector.load %arg4[%c43, %c0_160, %c0_161] : memref<49x4x256xf32, #tpu.memory_space<vmem>>, vector<1x4x256xf32>
    %267 = vector.shape_cast %266 : vector<1x4x256xf32> to vector<4x256xf32>
    %c0_162 = arith.constant 0 : index
    %c174 = arith.constant 174 : index
    %268 = vector.load %arg7[%c0_162, %c174] : memref<4x512xf32, #tpu.memory_space<vmem>>, vector<4x256xf32>
    %269 = arith.mulf %267, %268 : vector<4x256xf32>
    %270 = arith.addf %265, %269 : vector<4x256xf32>
    %c44 = arith.constant 44 : index
    %c0_163 = arith.constant 0 : index
    %c0_164 = arith.constant 0 : index
    %271 = vector.load %arg4[%c44, %c0_163, %c0_164] : memref<49x4x256xf32, #tpu.memory_space<vmem>>, vector<1x4x256xf32>
    %272 = vector.shape_cast %271 : vector<1x4x256xf32> to vector<4x256xf32>
    %c0_165 = arith.constant 0 : index
    %c175 = arith.constant 175 : index
    %273 = vector.load %arg7[%c0_165, %c175] : memref<4x512xf32, #tpu.memory_space<vmem>>, vector<4x256xf32>
    %274 = arith.mulf %272, %273 : vector<4x256xf32>
    %275 = arith.addf %270, %274 : vector<4x256xf32>
    %c45 = arith.constant 45 : index
    %c0_166 = arith.constant 0 : index
    %c0_167 = arith.constant 0 : index
    %276 = vector.load %arg4[%c45, %c0_166, %c0_167] : memref<49x4x256xf32, #tpu.memory_space<vmem>>, vector<1x4x256xf32>
    %277 = vector.shape_cast %276 : vector<1x4x256xf32> to vector<4x256xf32>
    %c0_168 = arith.constant 0 : index
    %c176 = arith.constant 176 : index
    %278 = vector.load %arg7[%c0_168, %c176] : memref<4x512xf32, #tpu.memory_space<vmem>>, vector<4x256xf32>
    %279 = arith.mulf %277, %278 : vector<4x256xf32>
    %280 = arith.addf %275, %279 : vector<4x256xf32>
    %c46 = arith.constant 46 : index
    %c0_169 = arith.constant 0 : index
    %c0_170 = arith.constant 0 : index
    %281 = vector.load %arg4[%c46, %c0_169, %c0_170] : memref<49x4x256xf32, #tpu.memory_space<vmem>>, vector<1x4x256xf32>
    %282 = vector.shape_cast %281 : vector<1x4x256xf32> to vector<4x256xf32>
    %c0_171 = arith.constant 0 : index
    %c177 = arith.constant 177 : index
    %283 = vector.load %arg7[%c0_171, %c177] : memref<4x512xf32, #tpu.memory_space<vmem>>, vector<4x256xf32>
    %284 = arith.mulf %282, %283 : vector<4x256xf32>
    %285 = arith.addf %280, %284 : vector<4x256xf32>
    %c47 = arith.constant 47 : index
    %c0_172 = arith.constant 0 : index
    %c0_173 = arith.constant 0 : index
    %286 = vector.load %arg4[%c47, %c0_172, %c0_173] : memref<49x4x256xf32, #tpu.memory_space<vmem>>, vector<1x4x256xf32>
    %287 = vector.shape_cast %286 : vector<1x4x256xf32> to vector<4x256xf32>
    %c0_174 = arith.constant 0 : index
    %c178 = arith.constant 178 : index
    %288 = vector.load %arg7[%c0_174, %c178] : memref<4x512xf32, #tpu.memory_space<vmem>>, vector<4x256xf32>
    %289 = arith.mulf %287, %288 : vector<4x256xf32>
    %290 = arith.addf %285, %289 : vector<4x256xf32>
    %c48 = arith.constant 48 : index
    %c0_175 = arith.constant 0 : index
    %c0_176 = arith.constant 0 : index
    %291 = vector.load %arg4[%c48, %c0_175, %c0_176] : memref<49x4x256xf32, #tpu.memory_space<vmem>>, vector<1x4x256xf32>
    %292 = vector.shape_cast %291 : vector<1x4x256xf32> to vector<4x256xf32>
    %c0_177 = arith.constant 0 : index
    %c179 = arith.constant 179 : index
    %293 = vector.load %arg7[%c0_177, %c179] : memref<4x512xf32, #tpu.memory_space<vmem>>, vector<4x256xf32>
    %294 = arith.mulf %292, %293 : vector<4x256xf32>
    %295 = arith.addf %290, %294 : vector<4x256xf32>
    %cst_178 = arith.constant dense<0.000000e+00> : vector<256xf32>
    %296 = vector.multi_reduction <add>, %295, %cst_178 [0] : vector<4x256xf32> to vector<256xf32>
    %297 = vector.shape_cast %296 : vector<256xf32> to vector<1x256xf32>
    %c0_179 = arith.constant 0 : index
    %c0_180 = arith.constant 0 : index
    %298 = vector.load %arg5[%c0_179, %c0_180] : memref<1x256xf32, #tpu.memory_space<vmem>>, vector<1x256xf32>
    %299 = arith.addf %297, %298 : vector<1x256xf32>
    %300 = arith.negf %299 : vector<1x256xf32>
    %301 = math.exp %300 : vector<1x256xf32>
    %cst_181 = arith.constant 1.000000e+00 : f32
    %302 = vector.broadcast %cst_181 : f32 to vector<1x256xf32>
    %303 = arith.addf %302, %301 : vector<1x256xf32>
    %304 = arith.divf %302, %303 : vector<1x256xf32>
    %305 = vector.broadcast %304 : vector<1x256xf32> to vector<4x256xf32>
    %306 = arith.mulf %305, %1 : vector<4x256xf32>
    %c0_182 = arith.constant 0 : index
    %c0_183 = arith.constant 0 : index
    %c0_184 = arith.constant 0 : index
    %307 = vector.load %arg6[%c0_182, %c0_183, %c0_184] : memref<1x4x256xf32, #tpu.memory_space<vmem>>, vector<1x4x256xf32>
    %308 = vector.shape_cast %307 : vector<1x4x256xf32> to vector<4x256xf32>
    %309 = vector.shape_cast %306 : vector<4x256xf32> to vector<1x4x256xf32>
    tpu.vector_store %arg6[%c0_182, %c0_183, %c0_184], %309 {strides = array<i32>} : memref<1x4x256xf32, #tpu.memory_space<vmem>>, vector<1x4x256xf32>,
    return
  }
  func.func @transform_0(%arg0: i32) -> (i32, i32, i32) {
    %c0_i32 = arith.constant 0 : i32
    %c0_i32_0 = arith.constant 0 : i32
    %c0_i32_1 = arith.constant 0 : i32
    return %arg0, %c0_i32, %c0_i32_0 : i32, i32, i32
  }
  func.func @transform_1(%arg0: i32) -> (i32, i32) {
    %c0_i32 = arith.constant 0 : i32
    %c0_i32_0 = arith.constant 0 : i32
    %c0_i32_1 = arith.constant 0 : i32
    return %c0_i32, %c0_i32_0 : i32, i32
  }
  func.func @transform_2(%arg0: i32) -> (i32, i32) {
    %c0_i32 = arith.constant 0 : i32
    %c0_i32_0 = arith.constant 0 : i32
    %c0_i32_1 = arith.constant 0 : i32
    return %c0_i32, %c0_i32_0 : i32, i32
  }
  func.func @transform_3(%arg0: i32) -> (i32, i32, i32) {
    %c0_i32 = arith.constant 0 : i32
    %c0_i32_0 = arith.constant 0 : i32
    %c0_i32_1 = arith.constant 0 : i32
    %c0_i32_2 = arith.constant 0 : i32
    return %c0_i32, %c0_i32_0, %c0_i32_1 : i32, i32, i32
  }
  func.func @transform_4(%arg0: i32) -> (i32, i32) {
    %c0_i32 = arith.constant 0 : i32
    %c0_i32_0 = arith.constant 0 : i32
    %c0_i32_1 = arith.constant 0 : i32
    return %c0_i32, %c0_i32_0 : i32, i32
  }
  func.func @transform_5(%arg0: i32) -> (i32, i32, i32) {
    %c0_i32 = arith.constant 0 : i32
    %c0_i32_0 = arith.constant 0 : i32
    %c0_i32_1 = arith.constant 0 : i32
    return %arg0, %c0_i32, %c0_i32_0 : i32, i32, i32
  }
}

</mosaic_0001>

<llo_original>
// kernel: tpu_custom_call.1
$region0: #{tpu_custom_call.1}
  #allocation0 [shape = 'u32[]', space=smem, size = 0x4, offset = 0x4, fixed_abs, tag = 'smem constant byte address 0x4 - core index']
  #allocation1 [shape = 'u32[144,128]{1,0:T(1,128)}', space=vmem, size = 0x12000, scoped, tag = 'internal scratch']
  #allocation2 [shape = 'f32[4,512]{1,0:T(4,128)}', space=vmem, size = 0x2000, scoped, tag = 'scratch operand']
  %s0 = inlined_call_operand.hbm [shape: f32[2,4,256], index: 0, kind: input, shape index: {}]
  %s1 = inlined_call_operand.hbm [shape: f32[4,4], index: 1, kind: input, shape index: {}]
  %s2 = inlined_call_operand.vmem [shape: f32[4,4], index: 2, kind: input, shape index: {}]
  %s3 = inlined_call_operand.hbm [shape: f32[49,4,256], index: 3, kind: input, shape index: {}]
  %s4 = inlined_call_operand.vmem [shape: f32[1,256], index: 4, kind: input, shape index: {}]
  %s5 = inlined_call_operand.hbm [shape: f32[2,4,256], index: 5, kind: output, shape index: {}]
  %s6 = sld [smem:[#allocation0]]
  $region65: #{tpu_custom_call.1} parent=0
    _
  %s8 = ssub.s32 1, %s6
  %s9 = scalar_select 0, %s8, %s6
  $region1: #{tpu_custom_call.1} parent=0
    #allocation3 [shape = 'u8[8192]{0}', space=vmem, size = 0x2000, scoped, tag = 'input window, operand 0']
    #allocation4 [shape = 's32[2]{0}', space=sflag, size = 0x8, scoped, tag = 'scoped memory for tpu_custom_call.1']
    #allocation5 [shape = 's32[2]{0}', space=sflag, size = 0x8, scoped, tag = 'scoped memory for tpu_custom_call.1']
    #allocation6 [shape = 'u8[2048]{0}', space=vmem, size = 0x800, scoped, tag = 'input window, operand 1, single buffered']
    #allocation7 [shape = 's32[1]{0}', space=sflag, size = 0x4, scoped, tag = 'scoped memory for tpu_custom_call.1']
    #allocation8 [shape = 'u8[200704]{0}', space=vmem, size = 0x31000, scoped, tag = 'input window, operand 3, single buffered']
    #allocation9 [shape = 'u8[8192]{0}', space=vmem, size = 0x2000, scoped, tag = 'output window, operand 0']
    %10 = vsyncpa [#allocation4], 0
    %s11 = scalar_lea.sflag [#allocation4], 1
    %12 = vsyncpa %s11, 0
    %13 = vsyncpa [#allocation7], 0
    %14 = vsyncpa [#allocation5], 0
    %s15 = scalar_lea.sflag [#allocation5], 1
    %16 = vsyncpa %s15, 0
    loop: start=0, step=1, limit=4
    $region2: #{tpu_custom_call.1} parent=1 // loop_pre_header
      _
    $region3: #{tpu_custom_call.1} parent=1 // loop_header
      %s18 = sphi 0, %s22
      %p19 = scmp.ge.s32.totalorder %s18, 4
      %s28 = sphi 0, %s30
      %s31 = sphi 0, %s28
      %s32 = sphi 0, %s31
      %s48 = sphi 0, %s32
      %s52 = sphi 0, %s52
      %s54 = sphi 0, %s52
      %s55 = sphi 0, %s54
      %s69 = sphi 0, %s55
      %s73 = sphi 0, %s73
      %s75 = sphi 0, %s73
      %s76 = sphi 0, %s75
      %s90 = sphi 0, %s76
      %s94 = sphi 0, %s94
      %s96 = sphi 0, %s94
      %s97 = sphi 0, %s96
      %s111 = sphi 0, %s97
      %s115 = sphi 0, %s115
      %s117 = sphi 0, %s115
      %s118 = sphi 0, %s117
      %s132 = sphi 0, %s118
      %s138 = sphi 0, %s140
      %s141 = sphi 0, %s138
      %s142 = sphi 0, %s141
      %s158 = sphi 0, %s142
    $region4: #{tpu_custom_call.1} parent=1 // loop_header_branch
      %21 = sbr.rel (%p19) target = $region8
    $region5: #{tpu_custom_call.1} parent=1 // loop_body
      %s23 = ssub.s32 %s18, 1
      %s24 = ssub.s32 %s18, 2
      %s25 = sadd.s32 %s18, 1
      %s26 = ssub.s32 %s18, %s25
      %p27 = scmp.eq.s32.totalorder %s26, 0
      %s29 = sadd.s32 %s28, 1
      %s30 = scalar_select %p27, %s28, %s29
      %p33 = pneg %p27
      %p34 = scmp.eq.s32.totalorder %s18, 1
      %p35 = por %p33, %p34
      %p36 = scmp.ne.s32.totalorder %s28, %s31
      %p37 = scmp.eq.s32.totalorder %s18, 0
      %p38 = por %p36, %p37
      %p39 = scmp.ne.s32.totalorder %s28, %s31
      %p40 = scmp.eq.s32.totalorder %s23, 1
      %p41 = por %p39, %p40
      %p42 = scmp.ne.s32.totalorder %s31, %s32
      %p43 = scmp.eq.s32.totalorder %s23, 0
      %p44 = por %p42, %p43
      %p45 = scmp.ne.s32.totalorder %s31, %s32
      %p46 = scmp.eq.s32.totalorder %s24, 1
      %p47 = por %p45, %p46
      %p49 = scmp.ne.s32.totalorder %s32, %s48
      %p50 = scmp.eq.s32.totalorder %s24, 0
      %p51 = por %p49, %p50
      %s53 = sadd.s32 %s52, 1
      %p56 = scmp.eq.s32.totalorder %s18, 1
      %p57 = scmp.ne.s32.totalorder %s52, %s54
      %p58 = scmp.eq.s32.totalorder %s18, 0
      %p59 = por %p57, %p58
      %p60 = scmp.ne.s32.totalorder %s52, %s54
      %p61 = scmp.eq.s32.totalorder %s23, 1
      %p62 = por %p60, %p61
      %p63 = scmp.ne.s32.totalorder %s54, %s55
      %p64 = scmp.eq.s32.totalorder %s23, 0
      %p65 = por %p63, %p64
      %p66 = scmp.ne.s32.totalorder %s54, %s55
      %p67 = scmp.eq.s32.totalorder %s24, 1
      %p68 = por %p66, %p67
      %p70 = scmp.ne.s32.totalorder %s55, %s69
      %p71 = scmp.eq.s32.totalorder %s24, 0
      %p72 = por %p70, %p71
      %s74 = sadd.s32 %s73, 1
      %p77 = scmp.eq.s32.totalorder %s18, 1
      %p78 = scmp.ne.s32.totalorder %s73, %s75
      %p79 = scmp.eq.s32.totalorder %s18, 0
      %p80 = por %p78, %p79
      %p81 = scmp.ne.s32.totalorder %s73, %s75
      %p82 = scmp.eq.s32.totalorder %s23, 1
      %p83 = por %p81, %p82
      %p84 = scmp.ne.s32.totalorder %s75, %s76
      %p85 = scmp.eq.s32.totalorder %s23, 0
      %p86 = por %p84, %p85
      %p87 = scmp.ne.s32.totalorder %s75, %s76
      %p88 = scmp.eq.s32.totalorder %s24, 1
      %p89 = por %p87, %p88
      %p91 = scmp.ne.s32.totalorder %s76, %s90
      %p92 = scmp.eq.s32.totalorder %s24, 0
      %p93 = por %p91, %p92
      %s95 = sadd.s32 %s94, 1
      %p98 = scmp.eq.s32.totalorder %s18, 1
      %p99 = scmp.ne.s32.totalorder %s94, %s96
      %p100 = scmp.eq.s32.totalorder %s18, 0
      %p101 = por %p99, %p100
      %p102 = scmp.ne.s32.totalorder %s94, %s96
      %p103 = scmp.eq.s32.totalorder %s23, 1
      %p104 = por %p102, %p103
      %p105 = scmp.ne.s32.totalorder %s96, %s97
      %p106 = scmp.eq.s32.totalorder %s23, 0
      %p107 = por %p105, %p106
      %p108 = scmp.ne.s32.totalorder %s96, %s97
      %p109 = scmp.eq.s32.totalorder %s24, 1
      %p110 = por %p108, %p109
      %p112 = scmp.ne.s32.totalorder %s97, %s111
      %p113 = scmp.eq.s32.totalorder %s24, 0
      %p114 = por %p112, %p113
      %s116 = sadd.s32 %s115, 1
      %p119 = scmp.eq.s32.totalorder %s18, 1
      %p120 = scmp.ne.s32.totalorder %s115, %s117
      %p121 = scmp.eq.s32.totalorder %s18, 0
      %p122 = por %p120, %p121
      %p123 = scmp.ne.s32.totalorder %s115, %s117
      %p124 = scmp.eq.s32.totalorder %s23, 1
      %p125 = por %p123, %p124
      %p126 = scmp.ne.s32.totalorder %s117, %s118
      %p127 = scmp.eq.s32.totalorder %s23, 0
      %p128 = por %p126, %p127
      %p129 = scmp.ne.s32.totalorder %s117, %s118
      %p130 = scmp.eq.s32.totalorder %s24, 1
      %p131 = por %p129, %p130
      %p133 = scmp.ne.s32.totalorder %s118, %s132
      %p134 = scmp.eq.s32.totalorder %s24, 0
      %p135 = por %p133, %p134
      %s136 = ssub.s32 %s18, %s25
      %p137 = scmp.eq.s32.totalorder %s136, 0
      %s139 = sadd.s32 %s138, 1
      %s140 = scalar_select %p137, %s138, %s139
      %p143 = pneg %p137
      %p144 = scmp.eq.s32.totalorder %s18, 1
      %p145 = por %p143, %p144
      %p146 = scmp.ne.s32.totalorder %s138, %s141
      %p147 = scmp.eq.s32.totalorder %s18, 0
      %p148 = por %p146, %p147
      %p149 = scmp.ne.s32.totalorder %s138, %s141
      %p150 = scmp.eq.s32.totalorder %s23, 1
      %p151 = por %p149, %p150
      %p152 = scmp.ne.s32.totalorder %s141, %s142
      %p153 = scmp.eq.s32.totalorder %s23, 0
      %p154 = por %p152, %p153
      %p155 = scmp.ne.s32.totalorder %s141, %s142
      %p156 = scmp.eq.s32.totalorder %s24, 1
      %p157 = por %p155, %p156
      %p159 = scmp.ne.s32.totalorder %s142, %s158
      %p160 = scmp.eq.s32.totalorder %s24, 0
      %p161 = por %p159, %p160
      %p162 = scmp.le.s32.totalorder 1, %s18
      %p163 = scmp.lt.s32.totalorder %s18, 3
      %p164 = pnand %p162, %p163
      %p165 = pneg %p164
      // Predicated region
      $region9: #{tpu_custom_call.1} parent=5 // pred_check
        _
      $region10: #{tpu_custom_call.1} parent=5 // pred_check_branch
        %167 = sbr.rel (%p164) target = $region12
      $region11: #{tpu_custom_call.1} parent=5 // pred_region
        %s168 = ssub.s32 %s18, 1
        // Predicated region
        $region13: #{tpu_custom_call.1} parent=11 // pred_check
          %p169 = pneg %p65
        $region14: #{tpu_custom_call.1} parent=11 // pred_check_branch
          %171 = sbr.rel (%p169) target = $region16
        $region15: #{tpu_custom_call.1} parent=11 // pred_region
          %s173 = ssub.s32 64, 64
          %174 = vsyncadd [#allocation7], %s173
          %s176 = sshll.u32 [#allocation6], 4
          %s177 = int_to_ptr.vmem [resolvable:$true] %s176
          %179 = dma.hbm_to_vmem [thread:$0]  %s1, 64, %s177, [#allocation7]
        $region16: #{tpu_custom_call.1} parent=11 // pred_fallthru
          _
        // Predicated region
        $region17: #{tpu_custom_call.1} parent=11 // pred_check
          %p180 = pneg %p86
        $region18: #{tpu_custom_call.1} parent=11 // pred_check_branch
          %182 = sbr.rel (%p180) target = $region20
        $region19: #{tpu_custom_call.1} parent=11 // pred_region
          _
        $region20: #{tpu_custom_call.1} parent=11 // pred_fallthru
          _
        // Predicated region
        $region21: #{tpu_custom_call.1} parent=11 // pred_check
          %p183 = pneg %p107
        $region22: #{tpu_custom_call.1} parent=11 // pred_check_branch
          %185 = sbr.rel (%p183) target = $region24
        $region23: #{tpu_custom_call.1} parent=11 // pred_region
          %s187 = ssub.s32 6272, 6272
          %188 = vsyncadd [#allocation7], %s187
          %s189 = sshll.u32 [#allocation8], 4
          %s190 = int_to_ptr.vmem [resolvable:$true] %s189
          %195 = dma.hbm_to_vmem [thread:$0]  %s3, 6272, %s190, [#allocation7], 128, 128, 8
        $region24: #{tpu_custom_call.1} parent=11 // pred_fallthru
          _
        // Predicated region
        $region25: #{tpu_custom_call.1} parent=11 // pred_check
          %p196 = pneg %p128
        $region26: #{tpu_custom_call.1} parent=11 // pred_check_branch
          %198 = sbr.rel (%p196) target = $region28
        $region27: #{tpu_custom_call.1} parent=11 // pred_region
          _
        $region28: #{tpu_custom_call.1} parent=11 // pred_fallthru
          _
      $region12: #{tpu_custom_call.1} parent=5 // pred_fallthru
        _
      %p199 = scmp.lt.s32.totalorder %s18, 2
      // Predicated region
      $region29: #{tpu_custom_call.1} parent=5 // pred_check
        %p200 = pneg %p199
      $region30: #{tpu_custom_call.1} parent=5 // pred_check_branch
        %202 = sbr.rel (%p200) target = $region32
      $region31: #{tpu_custom_call.1} parent=5 // pred_region
        // Predicated region
        $region33: #{tpu_custom_call.1} parent=31 // pred_check
          %p203 = pneg %p38
        $region34: #{tpu_custom_call.1} parent=31 // pred_check_branch
          %205 = sbr.rel (%p203) target = $region36
        $region35: #{tpu_custom_call.1} parent=31 // pred_region
          %s206 = sand.u32 %s28, 1
          %s207 = scalar_lea.sflag [#allocation4], %s206
          %s208 = sand.u32 %s28, 1
          %s209 = smul.addr %s208, 8
          %s210 = scalar_lea.vmem [#allocation3], %s209
          %s212 = ssub.s32 128, 128
          %213 = vsyncadd %s207, %s212
          %s214 = smul.addr %s18, 2
          %s215 = smul.addr %s214, 64
          %s216 = scalar_lea.hbm %s0, %s215
          %s218 = sshll.u32 %s210, 4
          %s219 = int_to_ptr.vmem [resolvable:$true] %s218
          %221 = dma.hbm_to_vmem [thread:$0]  %s216, 128, %s219, %s207
        $region36: #{tpu_custom_call.1} parent=31 // pred_fallthru
          _
      $region32: #{tpu_custom_call.1} parent=5 // pred_fallthru
        _
      %p222 = scmp.le.s32.totalorder 1, %s18
      %p223 = scmp.lt.s32.totalorder %s18, 3
      %p224 = pnand %p222, %p223
      %p225 = pneg %p224
      // Predicated region
      $region37: #{tpu_custom_call.1} parent=5 // pred_check
        _
      $region38: #{tpu_custom_call.1} parent=5 // pred_check_branch
        %227 = sbr.rel (%p224) target = $region40
      $region39: #{tpu_custom_call.1} parent=5 // pred_region
        %s228 = ssub.s32 %s18, 1
        %s229 = sand.u32 %s31, 1
        %s230 = scalar_lea.sflag [#allocation4], %s229
        %s231 = sand.u32 %s31, 1
        %s232 = smul.addr %s231, 8
        %s233 = scalar_lea.vmem [#allocation3], %s232
        // Predicated region
        $region41: #{tpu_custom_call.1} parent=39 // pred_check
          %p234 = pneg %p44
        $region42: #{tpu_custom_call.1} parent=39 // pred_check_branch
          %236 = sbr.rel (%p234) target = $region44
        $region43: #{tpu_custom_call.1} parent=39 // pred_region
          %237 = dma.done %s230, 128
        $region44: #{tpu_custom_call.1} parent=39 // pred_fallthru
          _
        // Predicated region
        $region45: #{tpu_custom_call.1} parent=39 // pred_check
          %p238 = pneg %p65
        $region46: #{tpu_custom_call.1} parent=39 // pred_check_branch
          %240 = sbr.rel (%p238) target = $region48
        $region47: #{tpu_custom_call.1} parent=39 // pred_region
          %241 = dma.done [#allocation7], 64
        $region48: #{tpu_custom_call.1} parent=39 // pred_fallthru
          _
        // Predicated region
        $region49: #{tpu_custom_call.1} parent=39 // pred_check
          %p242 = pneg %p107
        $region50: #{tpu_custom_call.1} parent=39 // pred_check_branch
          %244 = sbr.rel (%p242) target = $region52
        $region51: #{tpu_custom_call.1} parent=39 // pred_region
          %245 = dma.done [#allocation7], 6272
        $region52: #{tpu_custom_call.1} parent=39 // pred_fallthru
          _
        %s246 = sand.u32 %s31, 1
        %s247 = scalar_lea.sflag [#allocation4], %s246
        %s248 = sand.u32 %s31, 1
        %s249 = smul.addr %s248, 8
        %s250 = scalar_lea.vmem [#allocation3], %s249
        %p251 = pneg %p44
        %p252 = pneg %p41
        %p253 = pneg %p65
        %p254 = pneg %p62
        %p255 = pneg %p86
        %p256 = pneg %p83
        %p257 = pneg %p107
        %p258 = pneg %p104
        %p259 = pneg %p128
        %p260 = pneg %p125
        %p261 = pneg %p154
        %p262 = pneg %p151
        %s263 = sand.u32 %s141, 1
        %s264 = scalar_lea.sflag [#allocation5], %s263
        %s265 = sand.u32 %s141, 1
        %s266 = smul.addr %s265, 8
        %s267 = scalar_lea.vmem [#allocation9], %s266
        %v268 = vld [vmem:[%s233] sm:$0xff]
        %v269 = vld [vmem:[#allocation6] sm:$0xf]
        %v271 = vcombine.high %v268, %v268
        %vm272 = vcmask 31744
        %v274 = vsel %vm272, %v269, 0
        %vm276 = vcmask 1043456
        %v277 = vsel %vm276, %v268, 0
        %v279 = vsel %vm276, %v271, 0
        %281 = vmatprep.subr.mxu0 %v279
        %282 = vmatpush1.msra.mxu0 %v277
        %283 = vmatprep.subr.mxu0 0.0
        %284 = vmatpush1.msra.mxu0 0.0
        %285 = vmatprep.subr.mxu0 0.0
        %286 = vmatpush1.msra.mxu0 0.0
        %287 = vmatprep.subr.mxu0 0.0
        %288 = vmatpush1.msra.mxu0 0.0
        %289 = vmatprep.subr.mxu0 0.0
        %290 = vmatpush1.msra.mxu0 0.0
        %291 = vmatprep.subr.mxu0 0.0
        %292 = vmatpush1.msra.mxu0 0.0
        %293 = vmatprep.subr.mxu0 0.0
        %294 = vmatpush1.msra.mxu0 0.0
        %295 = vmatprep.subr.mxu0 0.0
        %296 = vmatpush1.msra.mxu0 0.0
        %297 = vmatprep.subr.mxu0 0.0
        %298 = vmatpush1.msra.mxu0 0.0
        %299 = vmatprep.subr.mxu0 0.0
        %300 = vmatpush1.msra.mxu0 0.0
        %301 = vmatprep.subr.mxu0 0.0
        %302 = vmatpush1.msra.mxu0 0.0
        %303 = vmatprep.subr.mxu0 0.0
        %304 = vmatpush1.msra.mxu0 0.0
        %305 = vmatprep.subr.mxu0 0.0
        %306 = vmatpush1.msra.mxu0 0.0
        %307 = vmatprep.subr.mxu0 0.0
        %308 = vmatpush1.msra.mxu0 0.0
        %309 = vmatprep.subr.mxu0 0.0
        %310 = vmatpush1.msra.mxu0 0.0
        %311 = vmatprep.subr.mxu0 0.0
        %312 = vmatpush1.msra.mxu0 0.0
        %313 = vmatprep.subr.mxu0 0.0
        %314 = vmatpush1.msra.mxu0 0.0
        %315 = vmatprep.subr.mxu0 0.0
        %316 = vmatpush1.msra.mxu0 0.0
        %317 = vmatprep.subr.mxu0 0.0
        %318 = vmatpush1.msra.mxu0 0.0
        %319 = vmatprep.subr.mxu0 0.0
        %320 = vmatpush1.msra.mxu0 0.0
        %321 = vmatprep.subr.mxu0 0.0
        %322 = vmatpush1.msra.mxu0 0.0
        %323 = vmatprep.subr.mxu0 0.0
        %324 = vmatpush1.msra.mxu0 0.0
        %325 = vmatprep.subr.mxu0 0.0
        %326 = vmatpush1.msra.mxu0 0.0
        %327 = vmatprep.subr.mxu0 0.0
        %328 = vmatpush1.msra.mxu0 0.0
        %329 = vmatprep.subr.mxu0 0.0
        %330 = vmatpush1.msra.mxu0 0.0
        %331 = vmatprep.subr.mxu0 0.0
        %332 = vmatpush1.msra.mxu0 0.0
        %333 = vmatprep.subr.mxu0 0.0
        %334 = vmatpush1.msra.mxu0 0.0
        %335 = vmatprep.subr.mxu0 0.0
        %336 = vmatpush1.msra.mxu0 0.0
        %337 = vmatprep.subr.mxu0 0.0
        %338 = vmatpush1.msra.mxu0 0.0
        %339 = vmatprep.subr.mxu0 0.0
        %340 = vmatpush1.msra.mxu0 0.0
        %341 = vmatprep.subr.mxu0 0.0
        %342 = vmatpush1.msra.mxu0 0.0
        %343 = vmatprep.subr.mxu0 0.0
        %344 = vmatpush1.msra.mxu0 0.0
        %345 = vmatprep.mubr.f32.mxu0 0.0
        %346 = vmatmul.mubr.f32.gmra.mrb[0].mxu0 %v274
        %v347 = vpop.f32.mrb[0].mxu0
        %v348 = vadd.f32 0.0, %v347
        %v349 = vpop.f32.mrb[0].mxu0
        %v350 = vadd.f32 0.0, %v349
        %351 = vdwg.mxu0
        %v352 = vld [vmem:[%s2] sm:$0xf]
        %v354 = vsel %vm272, %v352, 0
        %356 = vmatprep.subr.mxu0 %v279
        %357 = vmatpush1.msra.mxu0 %v277
        %358 = vmatprep.subr.mxu0 0.0
        %359 = vmatpush1.msra.mxu0 0.0
        %360 = vmatprep.subr.mxu0 0.0
        %361 = vmatpush1.msra.mxu0 0.0
        %362 = vmatprep.subr.mxu0 0.0
        %363 = vmatpush1.msra.mxu0 0.0
        %364 = vmatprep.subr.mxu0 0.0
        %365 = vmatpush1.msra.mxu0 0.0
        %366 = vmatprep.subr.mxu0 0.0
        %367 = vmatpush1.msra.mxu0 0.0
        %368 = vmatprep.subr.mxu0 0.0
        %369 = vmatpush1.msra.mxu0 0.0
        %370 = vmatprep.subr.mxu0 0.0
        %371 = vmatpush1.msra.mxu0 0.0
        %372 = vmatprep.subr.mxu0 0.0
        %373 = vmatpush1.msra.mxu0 0.0
        %374 = vmatprep.subr.mxu0 0.0
        %375 = vmatpush1.msra.mxu0 0.0
        %376 = vmatprep.subr.mxu0 0.0
        %377 = vmatpush1.msra.mxu0 0.0
        %378 = vmatprep.subr.mxu0 0.0
        %379 = vmatpush1.msra.mxu0 0.0
        %380 = vmatprep.subr.mxu0 0.0
        %381 = vmatpush1.msra.mxu0 0.0
        %382 = vmatprep.subr.mxu0 0.0
        %383 = vmatpush1.msra.mxu0 0.0
        %384 = vmatprep.subr.mxu0 0.0
        %385 = vmatpush1.msra.mxu0 0.0
        %386 = vmatprep.subr.mxu0 0.0
        %387 = vmatpush1.msra.mxu0 0.0
        %388 = vmatprep.subr.mxu0 0.0
        %389 = vmatpush1.msra.mxu0 0.0
        %390 = vmatprep.subr.mxu0 0.0
        %391 = vmatpush1.msra.mxu0 0.0
        %392 = vmatprep.subr.mxu0 0.0
        %393 = vmatpush1.msra.mxu0 0.0
        %394 = vmatprep.subr.mxu0 0.0
        %395 = vmatpush1.msra.mxu0 0.0
        %396 = vmatprep.subr.mxu0 0.0
        %397 = vmatpush1.msra.mxu0 0.0
        %398 = vmatprep.subr.mxu0 0.0
        %399 = vmatpush1.msra.mxu0 0.0
        %400 = vmatprep.subr.mxu0 0.0
        %401 = vmatpush1.msra.mxu0 0.0
        %402 = vmatprep.subr.mxu0 0.0
        %403 = vmatpush1.msra.mxu0 0.0
        %404 = vmatprep.subr.mxu0 0.0
        %405 = vmatpush1.msra.mxu0 0.0
        %406 = vmatprep.subr.mxu0 0.0
        %407 = vmatpush1.msra.mxu0 0.0
        %408 = vmatprep.subr.mxu0 0.0
        %409 = vmatpush1.msra.mxu0 0.0
        %410 = vmatprep.subr.mxu0 0.0
        %411 = vmatpush1.msra.mxu0 0.0
        %412 = vmatprep.subr.mxu0 0.0
        %413 = vmatpush1.msra.mxu0 0.0
        %414 = vmatprep.subr.mxu0 0.0
        %415 = vmatpush1.msra.mxu0 0.0
        %416 = vmatprep.subr.mxu0 0.0
        %417 = vmatpush1.msra.mxu0 0.0
        %418 = vmatprep.subr.mxu0 0.0
        %419 = vmatpush1.msra.mxu0 0.0
        %420 = vmatprep.mubr.f32.mxu0 0.0
        %421 = vmatmul.mubr.f32.gmra.mrb[0].mxu0 %v354
        %v422 = vpop.f32.mrb[0].mxu0
        %v423 = vadd.f32 0.0, %v422
        %v424 = vpop.f32.mrb[0].mxu0
        %v425 = vadd.f32 0.0, %v424
        %426 = vdwg.mxu0
        %427 = vst [vmem:[#allocation2] sm:$0xf] 0.0
        %428 = vst [vmem:[#allocation2 + $0xc] sm:$0xf] 0.0
        %v429 = vld [vmem:[%s233] sm:$0xf]
        %430 = vxpose.xlu0.b32.start [1/16] %v429, 128
        %431 = vxpose.xlu0.b32.cont [2/16] 0.0, 128
        %432 = vxpose.xlu0.b32.cont [3/16] 0.0, 128
        %433 = vxpose.xlu0.b32.cont [4/16] 0.0, 128
        %434 = vxpose.xlu0.b32.cont [5/16] 0.0, 128
        %435 = vxpose.xlu0.b32.cont [6/16] 0.0, 128
        %436 = vxpose.xlu0.b32.cont [7/16] 0.0, 128
        %437 = vxpose.xlu0.b32.cont [8/16] 0.0, 128
        %438 = vxpose.xlu0.b32.cont [9/16] 0.0, 128
        %439 = vxpose.xlu0.b32.cont [10/16] 0.0, 128
        %440 = vxpose.xlu0.b32.cont [11/16] 0.0, 128
        %441 = vxpose.xlu0.b32.cont [12/16] 0.0, 128
        %442 = vxpose.xlu0.b32.cont [13/16] 0.0, 128
        %443 = vxpose.xlu0.b32.cont [14/16] 0.0, 128
        %444 = vxpose.xlu0.b32.cont [15/16] 0.0, 128
        %445 = vxpose.xlu0.b32.end [16/16] 0.0, 128
        %v446 = vpop.trf.xlu0
        %v447 = vpop.trf.xlu0
        %v448 = vpop.trf.xlu0
        %v449 = vpop.trf.xlu0
        %v450 = vpop.trf.xlu0
        %v451 = vpop.trf.xlu0
        %v452 = vpop.trf.xlu0
        %v453 = vpop.trf.xlu0
        %v454 = vpop.trf.xlu0
        %v455 = vpop.trf.xlu0
        %v456 = vpop.trf.xlu0
        %v457 = vpop.trf.xlu0
        %v458 = vpop.trf.xlu0
        %v459 = vpop.trf.xlu0
        %v460 = vpop.trf.xlu0
        %v461 = vpop.trf.xlu0
        %v463 = vsel %vm272, %v446, 0
        %v466 = vsel %vm272, %v447, 0
        %v469 = vsel %vm272, %v448, 0
        %v472 = vsel %vm272, %v449, 0
        %v475 = vsel %vm272, %v450, 0
        %v478 = vsel %vm272, %v451, 0
        %v481 = vsel %vm272, %v452, 0
        %v484 = vsel %vm272, %v453, 0
        %v487 = vsel %vm272, %v454, 0
        %v490 = vsel %vm272, %v455, 0
        %v493 = vsel %vm272, %v456, 0
        %v496 = vsel %vm272, %v457, 0
        %v499 = vsel %vm272, %v458, 0
        %v502 = vsel %vm272, %v459, 0
        %v505 = vsel %vm272, %v460, 0
        %v508 = vsel %vm272, %v461, 0
        %v511 = vsel %vm276, %v348, 0
        %v514 = vsel %vm276, %v350, 0
        %516 = vmatprep.subr.mxu0 %v514
        %517 = vmatpush1.msra.mxu0 %v511
        %518 = vmatprep.subr.mxu0 0.0
        %519 = vmatpush1.msra.mxu0 0.0
        %520 = vmatprep.subr.mxu0 0.0
        %521 = vmatpush1.msra.mxu0 0.0
        %522 = vmatprep.subr.mxu0 0.0
        %523 = vmatpush1.msra.mxu0 0.0
        %524 = vmatprep.subr.mxu0 0.0
        %525 = vmatpush1.msra.mxu0 0.0
        %526 = vmatprep.subr.mxu0 0.0
        %527 = vmatpush1.msra.mxu0 0.0
        %528 = vmatprep.subr.mxu0 0.0
        %529 = vmatpush1.msra.mxu0 0.0
        %530 = vmatprep.subr.mxu0 0.0
        %531 = vmatpush1.msra.mxu0 0.0
        %532 = vmatprep.subr.mxu0 0.0
        %533 = vmatpush1.msra.mxu0 0.0
        %534 = vmatprep.subr.mxu0 0.0
        %535 = vmatpush1.msra.mxu0 0.0
        %536 = vmatprep.subr.mxu0 0.0
        %537 = vmatpush1.msra.mxu0 0.0
        %538 = vmatprep.subr.mxu0 0.0
        %539 = vmatpush1.msra.mxu0 0.0
        %540 = vmatprep.subr.mxu0 0.0
        %541 = vmatpush1.msra.mxu0 0.0
        %542 = vmatprep.subr.mxu0 0.0
        %543 = vmatpush1.msra.mxu0 0.0
        %544 = vmatprep.subr.mxu0 0.0
        %545 = vmatpush1.msra.mxu0 0.0
        %546 = vmatprep.subr.mxu0 0.0
        %547 = vmatpush1.msra.mxu0 0.0
        %548 = vmatprep.subr.mxu0 0.0
        %549 = vmatpush1.msra.mxu0 0.0
        %550 = vmatprep.subr.mxu0 0.0
        %551 = vmatpush1.msra.mxu0 0.0
        %552 = vmatprep.subr.mxu0 0.0
        %553 = vmatpush1.msra.mxu0 0.0
        %554 = vmatprep.subr.mxu0 0.0
        %555 = vmatpush1.msra.mxu0 0.0
        %556 = vmatprep.subr.mxu0 0.0
        %557 = vmatpush1.msra.mxu0 0.0
        %558 = vmatprep.subr.mxu0 0.0
        %559 = vmatpush1.msra.mxu0 0.0
        %560 = vmatprep.subr.mxu0 0.0
        %561 = vmatpush1.msra.mxu0 0.0
        %562 = vmatprep.subr.mxu0 0.0
        %563 = vmatpush1.msra.mxu0 0.0
        %564 = vmatprep.subr.mxu0 0.0
        %565 = vmatpush1.msra.mxu0 0.0
        %566 = vmatprep.subr.mxu0 0.0
        %567 = vmatpush1.msra.mxu0 0.0
        %568 = vmatprep.subr.mxu0 0.0
        %569 = vmatpush1.msra.mxu0 0.0
        %570 = vmatprep.subr.mxu0 0.0
        %571 = vmatpush1.msra.mxu0 0.0
        %572 = vmatprep.subr.mxu0 0.0
        %573 = vmatpush1.msra.mxu0 0.0
        %574 = vmatprep.subr.mxu0 0.0
        %575 = vmatpush1.msra.mxu0 0.0
        %576 = vmatprep.subr.mxu0 0.0
        %577 = vmatpush1.msra.mxu0 0.0
        %578 = vmatprep.subr.mxu0 0.0
        %579 = vmatpush1.msra.mxu0 0.0
        %580 = vmatprep.mubr.f32.mxu0 0.0
        %581 = vmatmul.mubr.f32.gmra.mrb[0].mxu0 %v463
        %v582 = vpop.f32.mrb[0].mxu0
        %v583 = vadd.f32 0.0, %v582
        %v584 = vpop.f32.mrb[0].mxu0
        %v585 = vadd.f32 0.0, %v584
        %586 = vmatprep.mubr.f32.mxu0 0.0
        %587 = vmatmul.mubr.f32.gmra.mrb[0].mxu0 %v466
        %v588 = vpop.f32.mrb[0].mxu0
        %v589 = vadd.f32 0.0, %v588
        %v590 = vpop.f32.mrb[0].mxu0
        %v591 = vadd.f32 0.0, %v590
        %592 = vmatprep.mubr.f32.mxu0 0.0
        %593 = vmatmul.mubr.f32.gmra.mrb[0].mxu0 %v469
        %v594 = vpop.f32.mrb[0].mxu0
        %v595 = vadd.f32 0.0, %v594
        %v596 = vpop.f32.mrb[0].mxu0
        %v597 = vadd.f32 0.0, %v596
        %598 = vmatprep.mubr.f32.mxu0 0.0
        %599 = vmatmul.mubr.f32.gmra.mrb[0].mxu0 %v472
        %v600 = vpop.f32.mrb[0].mxu0
        %v601 = vadd.f32 0.0, %v600
        %v602 = vpop.f32.mrb[0].mxu0
        %v603 = vadd.f32 0.0, %v602
        %604 = vmatprep.mubr.f32.mxu0 0.0
        %605 = vmatmul.mubr.f32.gmra.mrb[0].mxu0 %v475
        %v606 = vpop.f32.mrb[0].mxu0
        %v607 = vadd.f32 0.0, %v606
        %v608 = vpop.f32.mrb[0].mxu0
        %v609 = vadd.f32 0.0, %v608
        %610 = vmatprep.mubr.f32.mxu0 0.0
        %611 = vmatmul.mubr.f32.gmra.mrb[0].mxu0 %v478
        %v612 = vpop.f32.mrb[0].mxu0
        %v613 = vadd.f32 0.0, %v612
        %v614 = vpop.f32.mrb[0].mxu0
        %v615 = vadd.f32 0.0, %v614
        %616 = vmatprep.mubr.f32.mxu0 0.0
        %617 = vmatmul.mubr.f32.gmra.mrb[0].mxu0 %v481
        %v618 = vpop.f32.mrb[0].mxu0
        %v619 = vadd.f32 0.0, %v618
        %v620 = vpop.f32.mrb[0].mxu0
        %v621 = vadd.f32 0.0, %v620
        %622 = vmatprep.mubr.f32.mxu0 0.0
        %623 = vmatmul.mubr.f32.gmra.mrb[0].mxu0 %v484
        %v624 = vpop.f32.mrb[0].mxu0
        %v625 = vadd.f32 0.0, %v624
        %v626 = vpop.f32.mrb[0].mxu0
        %v627 = vadd.f32 0.0, %v626
        %628 = vmatprep.mubr.f32.mxu0 0.0
        %629 = vmatmul.mubr.f32.gmra.mrb[0].mxu0 %v487
        %v630 = vpop.f32.mrb[0].mxu0
        %v631 = vadd.f32 0.0, %v630
        %v632 = vpop.f32.mrb[0].mxu0
        %v633 = vadd.f32 0.0, %v632
        %634 = vmatprep.mubr.f32.mxu0 0.0
        %635 = vmatmul.mubr.f32.gmra.mrb[0].mxu0 %v490
        %v636 = vpop.f32.mrb[0].mxu0
        %v637 = vadd.f32 0.0, %v636
        %v638 = vpop.f32.mrb[0].mxu0
        %v639 = vadd.f32 0.0, %v638
        %640 = vmatprep.mubr.f32.mxu0 0.0
        %641 = vmatmul.mubr.f32.gmra.mrb[0].mxu0 %v493
        %v642 = vpop.f32.mrb[0].mxu0
        %v643 = vadd.f32 0.0, %v642
        %v644 = vpop.f32.mrb[0].mxu0
        %v645 = vadd.f32 0.0, %v644
        %646 = vmatprep.mubr.f32.mxu0 0.0
        %647 = vmatmul.mubr.f32.gmra.mrb[0].mxu0 %v496
        %v648 = vpop.f32.mrb[0].mxu0
        %v649 = vadd.f32 0.0, %v648
        %v650 = vpop.f32.mrb[0].mxu0
        %v651 = vadd.f32 0.0, %v650
        %652 = vmatprep.mubr.f32.mxu0 0.0
        %653 = vmatmul.mubr.f32.gmra.mrb[0].mxu0 %v499
        %v654 = vpop.f32.mrb[0].mxu0
        %v655 = vadd.f32 0.0, %v654
        %v656 = vpop.f32.mrb[0].mxu0
        %v657 = vadd.f32 0.0, %v656
        %658 = vmatprep.mubr.f32.mxu0 0.0
        %659 = vmatmul.mubr.f32.gmra.mrb[0].mxu0 %v502
        %v660 = vpop.f32.mrb[0].mxu0
        %v661 = vadd.f32 0.0, %v660
        %v662 = vpop.f32.mrb[0].mxu0
        %v663 = vadd.f32 0.0, %v662
        %664 = vmatprep.mubr.f32.mxu0 0.0
        %665 = vmatmul.mubr.f32.gmra.mrb[0].mxu0 %v505
        %v666 = vpop.f32.mrb[0].mxu0
        %v667 = vadd.f32 0.0, %v666
        %v668 = vpop.f32.mrb[0].mxu0
        %v669 = vadd.f32 0.0, %v668
        %670 = vmatprep.mubr.f32.mxu0 0.0
        %671 = vmatmul.mubr.f32.gmra.mrb[0].mxu0 %v508
        %v672 = vpop.f32.mrb[0].mxu0
        %v673 = vadd.f32 0.0, %v672
        %v674 = vpop.f32.mrb[0].mxu0
        %v675 = vadd.f32 0.0, %v674
        %676 = vdwg.mxu0
        %v677 = vmax.f32 %v583, %v585
        %678 = vmax.xlane.f32.xlu0 %v677
        %v679 = vpop.xlane.xlu0 %678
        %v680 = vmax.f32 %v589, %v591
        %681 = vmax.xlane.f32.xlu0 %v680
        %v682 = vpop.xlane.xlu0 %681
        %v683 = vmax.f32 %v595, %v597
        %684 = vmax.xlane.f32.xlu0 %v683
        %v685 = vpop.xlane.xlu0 %684
        %v686 = vmax.f32 %v601, %v603
        %687 = vmax.xlane.f32.xlu0 %v686
        %v688 = vpop.xlane.xlu0 %687
        %v689 = vmax.f32 %v607, %v609
        %690 = vmax.xlane.f32.xlu0 %v689
        %v691 = vpop.xlane.xlu0 %690
        %v692 = vmax.f32 %v613, %v615
        %693 = vmax.xlane.f32.xlu0 %v692
        %v694 = vpop.xlane.xlu0 %693
        %v695 = vmax.f32 %v619, %v621
        %696 = vmax.xlane.f32.xlu0 %v695
        %v697 = vpop.xlane.xlu0 %696
        %v698 = vmax.f32 %v625, %v627
        %699 = vmax.xlane.f32.xlu0 %v698
        %v700 = vpop.xlane.xlu0 %699
        %v701 = vmax.f32 %v631, %v633
        %702 = vmax.xlane.f32.xlu0 %v701
        %v703 = vpop.xlane.xlu0 %702
        %v704 = vmax.f32 %v637, %v639
        %705 = vmax.xlane.f32.xlu0 %v704
        %v706 = vpop.xlane.xlu0 %705
        %v707 = vmax.f32 %v643, %v645
        %708 = vmax.xlane.f32.xlu0 %v707
        %v709 = vpop.xlane.xlu0 %708
        %v710 = vmax.f32 %v649, %v651
        %711 = vmax.xlane.f32.xlu0 %v710
        %v712 = vpop.xlane.xlu0 %711
        %v713 = vmax.f32 %v655, %v657
        %714 = vmax.xlane.f32.xlu0 %v713
        %v715 = vpop.xlane.xlu0 %714
        %v716 = vmax.f32 %v661, %v663
        %717 = vmax.xlane.f32.xlu0 %v716
        %v718 = vpop.xlane.xlu0 %717
        %v719 = vmax.f32 %v667, %v669
        %720 = vmax.xlane.f32.xlu0 %v719
        %v721 = vpop.xlane.xlu0 %720
        %v722 = vmax.f32 %v673, %v675
        %723 = vmax.xlane.f32.xlu0 %v722
        %v724 = vpop.xlane.xlu0 %723
        %v725 = vsub.f32 %v583, %v679
        %v726 = vsub.f32 %v585, %v679
        %v727 = vsub.f32 %v589, %v682
        %v728 = vsub.f32 %v591, %v682
        %v729 = vsub.f32 %v595, %v685
        %v730 = vsub.f32 %v597, %v685
        %v731 = vsub.f32 %v601, %v688
        %v732 = vsub.f32 %v603, %v688
        %v733 = vsub.f32 %v607, %v691
        %v734 = vsub.f32 %v609, %v691
        %v735 = vsub.f32 %v613, %v694
        %v736 = vsub.f32 %v615, %v694
        %v737 = vsub.f32 %v619, %v697
        %v738 = vsub.f32 %v621, %v697
        %v739 = vsub.f32 %v625, %v700
        %v740 = vsub.f32 %v627, %v700
        %v741 = vsub.f32 %v631, %v703
        %v742 = vsub.f32 %v633, %v703
        %v743 = vsub.f32 %v637, %v706
        %v744 = vsub.f32 %v639, %v706
        %v745 = vsub.f32 %v643, %v709
        %v746 = vsub.f32 %v645, %v709
        %v747 = vsub.f32 %v649, %v712
        %v748 = vsub.f32 %v651, %v712
        %v749 = vsub.f32 %v655, %v715
        %v750 = vsub.f32 %v657, %v715
        %v751 = vsub.f32 %v661, %v718
        %v752 = vsub.f32 %v663, %v718
        %v753 = vsub.f32 %v667, %v721
        %v754 = vsub.f32 %v669, %v721
        %v755 = vsub.f32 %v673, %v724
        %v756 = vsub.f32 %v675, %v724
        %v757 = vmul.f32 %v725, 1.442695
        %v758 = vpow.pop %v757
        %v759 = vmul.f32 %v726, 1.442695
        %v760 = vpow.pop %v759
        %v761 = vmul.f32 %v727, 1.442695
        %v762 = vpow.pop %v761
        %v763 = vmul.f32 %v728, 1.442695
        %v764 = vpow.pop %v763
        %v765 = vmul.f32 %v729, 1.442695
        %v766 = vpow.pop %v765
        %v767 = vmul.f32 %v730, 1.442695
        %v768 = vpow.pop %v767
        %v769 = vmul.f32 %v731, 1.442695
        %v770 = vpow.pop %v769
        %v771 = vmul.f32 %v732, 1.442695
        %v772 = vpow.pop %v771
        %v773 = vmul.f32 %v733, 1.442695
        %v774 = vpow.pop %v773
        %v775 = vmul.f32 %v734, 1.442695
        %v776 = vpow.pop %v775
        %v777 = vmul.f32 %v735, 1.442695
        %v778 = vpow.pop %v777
        %v779 = vmul.f32 %v736, 1.442695
        %v780 = vpow.pop %v779
        %v781 = vmul.f32 %v737, 1.442695
        %v782 = vpow.pop %v781
        %v783 = vmul.f32 %v738, 1.442695
        %v784 = vpow.pop %v783
        %v785 = vmul.f32 %v739, 1.442695
        %v786 = vpow.pop %v785
        %v787 = vmul.f32 %v740, 1.442695
        %v788 = vpow.pop %v787
        %v789 = vmul.f32 %v741, 1.442695
        %v790 = vpow.pop %v789
        %v791 = vmul.f32 %v742, 1.442695
        %v792 = vpow.pop %v791
        %v793 = vmul.f32 %v743, 1.442695
        %v794 = vpow.pop %v793
        %v795 = vmul.f32 %v744, 1.442695
        %v796 = vpow.pop %v795
        %v797 = vmul.f32 %v745, 1.442695
        %v798 = vpow.pop %v797
        %v799 = vmul.f32 %v746, 1.442695
        %v800 = vpow.pop %v799
        %v801 = vmul.f32 %v747, 1.442695
        %v802 = vpow.pop %v801
        %v803 = vmul.f32 %v748, 1.442695
        %v804 = vpow.pop %v803
        %v805 = vmul.f32 %v749, 1.442695
        %v806 = vpow.pop %v805
        %v807 = vmul.f32 %v750, 1.442695
        %v808 = vpow.pop %v807
        %v809 = vmul.f32 %v751, 1.442695
        %v810 = vpow.pop %v809
        %v811 = vmul.f32 %v752, 1.442695
        %v812 = vpow.pop %v811
        %v813 = vmul.f32 %v753, 1.442695
        %v814 = vpow.pop %v813
        %v815 = vmul.f32 %v754, 1.442695
        %v816 = vpow.pop %v815
        %v817 = vmul.f32 %v755, 1.442695
        %v818 = vpow.pop %v817
        %v819 = vmul.f32 %v756, 1.442695
        %v820 = vpow.pop %v819
        %v821 = vadd.f32 %v758, %v760
        %822 = vadd.xlane.f32.xlu0 %v821
        %v823 = vpop.xlane.xlu0 %822
        %v824 = vadd.f32 %v762, %v764
        %825 = vadd.xlane.f32.xlu0 %v824
        %v826 = vpop.xlane.xlu0 %825
        %v827 = vadd.f32 %v766, %v768
        %828 = vadd.xlane.f32.xlu0 %v827
        %v829 = vpop.xlane.xlu0 %828
        %v830 = vadd.f32 %v770, %v772
        %831 = vadd.xlane.f32.xlu0 %v830
        %v832 = vpop.xlane.xlu0 %831
        %v833 = vadd.f32 %v774, %v776
        %834 = vadd.xlane.f32.xlu0 %v833
        %v835 = vpop.xlane.xlu0 %834
        %v836 = vadd.f32 %v778, %v780
        %837 = vadd.xlane.f32.xlu0 %v836
        %v838 = vpop.xlane.xlu0 %837
        %v839 = vadd.f32 %v782, %v784
        %840 = vadd.xlane.f32.xlu0 %v839
        %v841 = vpop.xlane.xlu0 %840
        %v842 = vadd.f32 %v786, %v788
        %843 = vadd.xlane.f32.xlu0 %v842
        %v844 = vpop.xlane.xlu0 %843
        %v845 = vadd.f32 %v790, %v792
        %846 = vadd.xlane.f32.xlu0 %v845
        %v847 = vpop.xlane.xlu0 %846
        %v848 = vadd.f32 %v794, %v796
        %849 = vadd.xlane.f32.xlu0 %v848
        %v850 = vpop.xlane.xlu0 %849
        %v851 = vadd.f32 %v798, %v800
        %852 = vadd.xlane.f32.xlu0 %v851
        %v853 = vpop.xlane.xlu0 %852
        %v854 = vadd.f32 %v802, %v804
        %855 = vadd.xlane.f32.xlu0 %v854
        %v856 = vpop.xlane.xlu0 %855
        %v857 = vadd.f32 %v806, %v808
        %858 = vadd.xlane.f32.xlu0 %v857
        %v859 = vpop.xlane.xlu0 %858
        %v860 = vadd.f32 %v810, %v812
        %861 = vadd.xlane.f32.xlu0 %v860
        %v862 = vpop.xlane.xlu0 %861
        %v863 = vadd.f32 %v814, %v816
        %864 = vadd.xlane.f32.xlu0 %v863
        %v865 = vpop.xlane.xlu0 %864
        %v866 = vadd.f32 %v818, %v820
        %867 = vadd.xlane.f32.xlu0 %v866
        %v868 = vpop.xlane.xlu0 %867
        %v869 = vrcp.pop %v823
        %v870 = vrcp.pop %v826
        %v871 = vrcp.pop %v829
        %v872 = vrcp.pop %v832
        %v873 = vrcp.pop %v835
        %v874 = vrcp.pop %v838
        %v875 = vrcp.pop %v841
        %v876 = vrcp.pop %v844
        %v877 = vrcp.pop %v847
        %v878 = vrcp.pop %v850
        %v879 = vrcp.pop %v853
        %v880 = vrcp.pop %v856
        %v881 = vrcp.pop %v859
        %v882 = vrcp.pop %v862
        %v883 = vrcp.pop %v865
        %v884 = vrcp.pop %v868
        %v885 = vmul.f32 %v758, %v869
        %v886 = vmul.f32 %v760, %v869
        %v887 = vmul.f32 %v762, %v870
        %v888 = vmul.f32 %v764, %v870
        %v889 = vmul.f32 %v766, %v871
        %v890 = vmul.f32 %v768, %v871
        %v891 = vmul.f32 %v770, %v872
        %v892 = vmul.f32 %v772, %v872
        %v893 = vmul.f32 %v774, %v873
        %v894 = vmul.f32 %v776, %v873
        %v895 = vmul.f32 %v778, %v874
        %v896 = vmul.f32 %v780, %v874
        %v897 = vmul.f32 %v782, %v875
        %v898 = vmul.f32 %v784, %v875
        %v899 = vmul.f32 %v786, %v876
        %v900 = vmul.f32 %v788, %v876
        %v901 = vmul.f32 %v790, %v877
        %v902 = vmul.f32 %v792, %v877
        %v903 = vmul.f32 %v794, %v878
        %v904 = vmul.f32 %v796, %v878
        %v905 = vmul.f32 %v798, %v879
        %v906 = vmul.f32 %v800, %v879
        %v907 = vmul.f32 %v802, %v880
        %v908 = vmul.f32 %v804, %v880
        %v909 = vmul.f32 %v806, %v881
        %v910 = vmul.f32 %v808, %v881
        %v911 = vmul.f32 %v810, %v882
        %v912 = vmul.f32 %v812, %v882
        %v913 = vmul.f32 %v814, %v883
        %v914 = vmul.f32 %v816, %v883
        %v915 = vmul.f32 %v818, %v884
        %v916 = vmul.f32 %v820, %v884
        %917 = vmatprep.subr.mxu0 %v886
        %918 = vmatpush1.xpose.msra.mxu0 %v885
        %919 = vmatprep.subr.mxu0 %v888
        %920 = vmatpush1.xpose.msra.mxu0 %v887
        %921 = vmatprep.subr.mxu0 %v890
        %922 = vmatpush1.xpose.msra.mxu0 %v889
        %923 = vmatprep.subr.mxu0 %v892
        %924 = vmatpush1.xpose.msra.mxu0 %v891
        %925 = vmatprep.subr.mxu0 %v894
        %926 = vmatpush1.xpose.msra.mxu0 %v893
        %927 = vmatprep.subr.mxu0 %v896
        %928 = vmatpush1.xpose.msra.mxu0 %v895
        %929 = vmatprep.subr.mxu0 %v898
        %930 = vmatpush1.xpose.msra.mxu0 %v897
        %931 = vmatprep.subr.mxu0 %v900
        %932 = vmatpush1.xpose.msra.mxu0 %v899
        %933 = vmatprep.subr.mxu0 %v902
        %934 = vmatpush1.xpose.msra.mxu0 %v901
        %935 = vmatprep.subr.mxu0 %v904
        %936 = vmatpush1.xpose.msra.mxu0 %v903
        %937 = vmatprep.subr.mxu0 %v906
        %938 = vmatpush1.xpose.msra.mxu0 %v905
        %939 = vmatprep.subr.mxu0 %v908
        %940 = vmatpush1.xpose.msra.mxu0 %v907
        %941 = vmatprep.subr.mxu0 %v910
        %942 = vmatpush1.xpose.msra.mxu0 %v909
        %943 = vmatprep.subr.mxu0 %v912
        %944 = vmatpush1.xpose.msra.mxu0 %v911
        %945 = vmatprep.subr.mxu0 %v914
        %946 = vmatpush1.xpose.msra.mxu0 %v913
        %947 = vmatprep.subr.mxu0 %v916
        %948 = vmatpush1.xpose.msra.mxu0 %v915
        %949 = vmatprep.subr.mxu0 0.0
        %950 = vmatpush1.xpose.msra.mxu0 0.0
        %951 = vmatprep.subr.mxu0 0.0
        %952 = vmatpush1.xpose.msra.mxu0 0.0
        %953 = vmatprep.subr.mxu0 0.0
        %954 = vmatpush1.xpose.msra.mxu0 0.0
        %955 = vmatprep.subr.mxu0 0.0
        %956 = vmatpush1.xpose.msra.mxu0 0.0
        %957 = vmatprep.subr.mxu0 0.0
        %958 = vmatpush1.xpose.msra.mxu0 0.0
        %959 = vmatprep.subr.mxu0 0.0
        %960 = vmatpush1.xpose.msra.mxu0 0.0
        %961 = vmatprep.subr.mxu0 0.0
        %962 = vmatpush1.xpose.msra.mxu0 0.0
        %963 = vmatprep.subr.mxu0 0.0
        %964 = vmatpush1.xpose.msra.mxu0 0.0
        %965 = vmatprep.subr.mxu0 0.0
        %966 = vmatpush1.xpose.msra.mxu0 0.0
        %967 = vmatprep.subr.mxu0 0.0
        %968 = vmatpush1.xpose.msra.mxu0 0.0
        %969 = vmatprep.subr.mxu0 0.0
        %970 = vmatpush1.xpose.msra.mxu0 0.0
        %971 = vmatprep.subr.mxu0 0.0
        %972 = vmatpush1.xpose.msra.mxu0 0.0
        %973 = vmatprep.subr.mxu0 0.0
        %974 = vmatpush1.xpose.msra.mxu0 0.0
        %975 = vmatprep.subr.mxu0 0.0
        %976 = vmatpush1.xpose.msra.mxu0 0.0
        %977 = vmatprep.subr.mxu0 0.0
        %978 = vmatpush1.xpose.msra.mxu0 0.0
        %979 = vmatprep.subr.mxu0 0.0
        %980 = vmatpush1.xpose.msra.mxu0 0.0
        %981 = vmatprep.mubr.f32.mxu0 %v425
        %982 = vmatmul.mubr.f32.gmra.mrb[0].mxu0 %v423
        %v983 = vpop.f32.mrb[0].mxu0
        %v984 = vadd.f32 0.0, %v983
        %v985 = vpop.f32.mrb[0].mxu0
        %986 = vdwg.mxu0
        %s987 = sadd.s32 0, 128
        %s988 = sshra.s32 %s987, 7
        %s989 = sand.u32 %s987, 127
        %s990 = smul.addr %s988, 4
        %s991 = scalar_lea.vmem [#allocation2], %s990
        %992 = vst [vmem:[%s991] sm:$0xf] %v984
        %s993 = scalar_lea.vmem %s233, 4 [#allocation3]
        %v994 = vld [vmem:[%s993] sm:$0xf]
        %995 = vxpose.xlu0.b32.start [1/16] %v994, 128
        %996 = vxpose.xlu0.b32.cont [2/16] 0.0, 128
        %997 = vxpose.xlu0.b32.cont [3/16] 0.0, 128
        %998 = vxpose.xlu0.b32.cont [4/16] 0.0, 128
        %999 = vxpose.xlu0.b32.cont [5/16] 0.0, 128
        %1000 = vxpose.xlu0.b32.cont [6/16] 0.0, 128
        %1001 = vxpose.xlu0.b32.cont [7/16] 0.0, 128
        %1002 = vxpose.xlu0.b32.cont [8/16] 0.0, 128
        %1003 = vxpose.xlu0.b32.cont [9/16] 0.0, 128
        %1004 = vxpose.xlu0.b32.cont [10/16] 0.0, 128
        %1005 = vxpose.xlu0.b32.cont [11/16] 0.0, 128
        %1006 = vxpose.xlu0.b32.cont [12/16] 0.0, 128
        %1007 = vxpose.xlu0.b32.cont [13/16] 0.0, 128
        %1008 = vxpose.xlu0.b32.cont [14/16] 0.0, 128
        %1009 = vxpose.xlu0.b32.cont [15/16] 0.0, 128
        %1010 = vxpose.xlu0.b32.end [16/16] 0.0, 128
        %v1011 = vpop.trf.xlu0
        %v1012 = vpop.trf.xlu0
        %v1013 = vpop.trf.xlu0
        %v1014 = vpop.trf.xlu0
        %v1015 = vpop.trf.xlu0
        %v1016 = vpop.trf.xlu0
        %v1017 = vpop.trf.xlu0
        %v1018 = vpop.trf.xlu0
        %v1019 = vpop.trf.xlu0
        %v1020 = vpop.trf.xlu0
        %v1021 = vpop.trf.xlu0
        %v1022 = vpop.trf.xlu0
        %v1023 = vpop.trf.xlu0
        %v1024 = vpop.trf.xlu0
        %v1025 = vpop.trf.xlu0
        %v1026 = vpop.trf.xlu0
        %v1028 = vsel %vm272, %v1011, 0
        %v1031 = vsel %vm272, %v1012, 0
        %v1034 = vsel %vm272, %v1013, 0
        %v1037 = vsel %vm272, %v1014, 0
        %v1040 = vsel %vm272, %v1015, 0
        %v1043 = vsel %vm272, %v1016, 0
        %v1046 = vsel %vm272, %v1017, 0
        %v1049 = vsel %vm272, %v1018, 0
        %v1052 = vsel %vm272, %v1019, 0
        %v1055 = vsel %vm272, %v1020, 0
        %v1058 = vsel %vm272, %v1021, 0
        %v1061 = vsel %vm272, %v1022, 0
        %v1064 = vsel %vm272, %v1023, 0
        %v1067 = vsel %vm272, %v1024, 0
        %v1070 = vsel %vm272, %v1025, 0
        %v1073 = vsel %vm272, %v1026, 0
        %1075 = vmatprep.subr.mxu0 %v514
        %1076 = vmatpush1.msra.mxu0 %v511
        %1077 = vmatprep.subr.mxu0 0.0
        %1078 = vmatpush1.msra.mxu0 0.0
        %1079 = vmatprep.subr.mxu0 0.0
        %1080 = vmatpush1.msra.mxu0 0.0
        %1081 = vmatprep.subr.mxu0 0.0
        %1082 = vmatpush1.msra.mxu0 0.0
        %1083 = vmatprep.subr.mxu0 0.0
        %1084 = vmatpush1.msra.mxu0 0.0
        %1085 = vmatprep.subr.mxu0 0.0
        %1086 = vmatpush1.msra.mxu0 0.0
        %1087 = vmatprep.subr.mxu0 0.0
        %1088 = vmatpush1.msra.mxu0 0.0
        %1089 = vmatprep.subr.mxu0 0.0
        %1090 = vmatpush1.msra.mxu0 0.0
        %1091 = vmatprep.subr.mxu0 0.0
        %1092 = vmatpush1.msra.mxu0 0.0
        %1093 = vmatprep.subr.mxu0 0.0
        %1094 = vmatpush1.msra.mxu0 0.0
        %1095 = vmatprep.subr.mxu0 0.0
        %1096 = vmatpush1.msra.mxu0 0.0
        %1097 = vmatprep.subr.mxu0 0.0
        %1098 = vmatpush1.msra.mxu0 0.0
        %1099 = vmatprep.subr.mxu0 0.0
        %1100 = vmatpush1.msra.mxu0 0.0
        %1101 = vmatprep.subr.mxu0 0.0
        %1102 = vmatpush1.msra.mxu0 0.0
        %1103 = vmatprep.subr.mxu0 0.0
        %1104 = vmatpush1.msra.mxu0 0.0
        %1105 = vmatprep.subr.mxu0 0.0
        %1106 = vmatpush1.msra.mxu0 0.0
        %1107 = vmatprep.subr.mxu0 0.0
        %1108 = vmatpush1.msra.mxu0 0.0
        %1109 = vmatprep.subr.mxu0 0.0
        %1110 = vmatpush1.msra.mxu0 0.0
        %1111 = vmatprep.subr.mxu0 0.0
        %1112 = vmatpush1.msra.mxu0 0.0
        %1113 = vmatprep.subr.mxu0 0.0
        %1114 = vmatpush1.msra.mxu0 0.0
        %1115 = vmatprep.subr.mxu0 0.0
        %1116 = vmatpush1.msra.mxu0 0.0
        %1117 = vmatprep.subr.mxu0 0.0
        %1118 = vmatpush1.msra.mxu0 0.0
        %1119 = vmatprep.subr.mxu0 0.0
        %1120 = vmatpush1.msra.mxu0 0.0
        %1121 = vmatprep.subr.mxu0 0.0
        %1122 = vmatpush1.msra.mxu0 0.0
        %1123 = vmatprep.subr.mxu0 0.0
        %1124 = vmatpush1.msra.mxu0 0.0
        %1125 = vmatprep.subr.mxu0 0.0
        %1126 = vmatpush1.msra.mxu0 0.0
        %1127 = vmatprep.subr.mxu0 0.0
        %1128 = vmatpush1.msra.mxu0 0.0
        %1129 = vmatprep.subr.mxu0 0.0
        %1130 = vmatpush1.msra.mxu0 0.0
        %1131 = vmatprep.subr.mxu0 0.0
        %1132 = vmatpush1.msra.mxu0 0.0
        %1133 = vmatprep.subr.mxu0 0.0
        %1134 = vmatpush1.msra.mxu0 0.0
        %1135 = vmatprep.subr.mxu0 0.0
        %1136 = vmatpush1.msra.mxu0 0.0
        %1137 = vmatprep.subr.mxu0 0.0
        %1138 = vmatpush1.msra.mxu0 0.0
        %1139 = vmatprep.mubr.f32.mxu0 0.0
        %1140 = vmatmul.mubr.f32.gmra.mrb[0].mxu0 %v1028
        %v1141 = vpop.f32.mrb[0].mxu0
        %v1142 = vadd.f32 0.0, %v1141
        %v1143 = vpop.f32.mrb[0].mxu0
        %v1144 = vadd.f32 0.0, %v1143
        %1145 = vmatprep.mubr.f32.mxu0 0.0
        %1146 = vmatmul.mubr.f32.gmra.mrb[0].mxu0 %v1031
        %v1147 = vpop.f32.mrb[0].mxu0
        %v1148 = vadd.f32 0.0, %v1147
        %v1149 = vpop.f32.mrb[0].mxu0
        %v1150 = vadd.f32 0.0, %v1149
        %1151 = vmatprep.mubr.f32.mxu0 0.0
        %1152 = vmatmul.mubr.f32.gmra.mrb[0].mxu0 %v1034
        %v1153 = vpop.f32.mrb[0].mxu0
        %v1154 = vadd.f32 0.0, %v1153
        %v1155 = vpop.f32.mrb[0].mxu0
        %v1156 = vadd.f32 0.0, %v1155
        %1157 = vmatprep.mubr.f32.mxu0 0.0
        %1158 = vmatmul.mubr.f32.gmra.mrb[0].mxu0 %v1037
        %v1159 = vpop.f32.mrb[0].mxu0
        %v1160 = vadd.f32 0.0, %v1159
        %v1161 = vpop.f32.mrb[0].mxu0
        %v1162 = vadd.f32 0.0, %v1161
        %1163 = vmatprep.mubr.f32.mxu0 0.0
        %1164 = vmatmul.mubr.f32.gmra.mrb[0].mxu0 %v1040
        %v1165 = vpop.f32.mrb[0].mxu0
        %v1166 = vadd.f32 0.0, %v1165
        %v1167 = vpop.f32.mrb[0].mxu0
        %v1168 = vadd.f32 0.0, %v1167
        %1169 = vmatprep.mubr.f32.mxu0 0.0
        %1170 = vmatmul.mubr.f32.gmra.mrb[0].mxu0 %v1043
        %v1171 = vpop.f32.mrb[0].mxu0
        %v1172 = vadd.f32 0.0, %v1171
        %v1173 = vpop.f32.mrb[0].mxu0
        %v1174 = vadd.f32 0.0, %v1173
        %1175 = vmatprep.mubr.f32.mxu0 0.0
        %1176 = vmatmul.mubr.f32.gmra.mrb[0].mxu0 %v1046
        %v1177 = vpop.f32.mrb[0].mxu0
        %v1178 = vadd.f32 0.0, %v1177
        %v1179 = vpop.f32.mrb[0].mxu0
        %v1180 = vadd.f32 0.0, %v1179
        %1181 = vmatprep.mubr.f32.mxu0 0.0
        %1182 = vmatmul.mubr.f32.gmra.mrb[0].mxu0 %v1049
        %v1183 = vpop.f32.mrb[0].mxu0
        %v1184 = vadd.f32 0.0, %v1183
        %v1185 = vpop.f32.mrb[0].mxu0
        %v1186 = vadd.f32 0.0, %v1185
        %1187 = vmatprep.mubr.f32.mxu0 0.0
        %1188 = vmatmul.mubr.f32.gmra.mrb[0].mxu0 %v1052
        %v1189 = vpop.f32.mrb[0].mxu0
        %v1190 = vadd.f32 0.0, %v1189
        %v1191 = vpop.f32.mrb[0].mxu0
        %v1192 = vadd.f32 0.0, %v1191
        %1193 = vmatprep.mubr.f32.mxu0 0.0
        %1194 = vmatmul.mubr.f32.gmra.mrb[0].mxu0 %v1055
        %v1195 = vpop.f32.mrb[0].mxu0
        %v1196 = vadd.f32 0.0, %v1195
        %v1197 = vpop.f32.mrb[0].mxu0
        %v1198 = vadd.f32 0.0, %v1197
        %1199 = vmatprep.mubr.f32.mxu0 0.0
        %1200 = vmatmul.mubr.f32.gmra.mrb[0].mxu0 %v1058
        %v1201 = vpop.f32.mrb[0].mxu0
        %v1202 = vadd.f32 0.0, %v1201
        %v1203 = vpop.f32.mrb[0].mxu0
        %v1204 = vadd.f32 0.0, %v1203
        %1205 = vmatprep.mubr.f32.mxu0 0.0
        %1206 = vmatmul.mubr.f32.gmra.mrb[0].mxu0 %v1061
        %v1207 = vpop.f32.mrb[0].mxu0
        %v1208 = vadd.f32 0.0, %v1207
        %v1209 = vpop.f32.mrb[0].mxu0
        %v1210 = vadd.f32 0.0, %v1209
        %1211 = vmatprep.mubr.f32.mxu0 0.0
        %1212 = vmatmul.mubr.f32.gmra.mrb[0].mxu0 %v1064
        %v1213 = vpop.f32.mrb[0].mxu0
        %v1214 = vadd.f32 0.0, %v1213
        %v1215 = vpop.f32.mrb[0].mxu0
        %v1216 = vadd.f32 0.0, %v1215
        %1217 = vmatprep.mubr.f32.mxu0 0.0
        %1218 = vmatmul.mubr.f32.gmra.mrb[0].mxu0 %v1067
        %v1219 = vpop.f32.mrb[0].mxu0
        %v1220 = vadd.f32 0.0, %v1219
        %v1221 = vpop.f32.mrb[0].mxu0
        %v1222 = vadd.f32 0.0, %v1221
        %1223 = vmatprep.mubr.f32.mxu0 0.0
        %1224 = vmatmul.mubr.f32.gmra.mrb[0].mxu0 %v1070
        %v1225 = vpop.f32.mrb[0].mxu0
        %v1226 = vadd.f32 0.0, %v1225
        %v1227 = vpop.f32.mrb[0].mxu0
        %v1228 = vadd.f32 0.0, %v1227
        %1229 = vmatprep.mubr.f32.mxu0 0.0
        %1230 = vmatmul.mubr.f32.gmra.mrb[0].mxu0 %v1073
        %v1231 = vpop.f32.mrb[0].mxu0
        %v1232 = vadd.f32 0.0, %v1231
        %v1233 = vpop.f32.mrb[0].mxu0
        %v1234 = vadd.f32 0.0, %v1233
        %1235 = vdwg.mxu0
        %v1236 = vmax.f32 %v1142, %v1144
        %1237 = vmax.xlane.f32.xlu0 %v1236
        %v1238 = vpop.xlane.xlu0 %1237
        %v1239 = vmax.f32 %v1148, %v1150
        %1240 = vmax.xlane.f32.xlu0 %v1239
        %v1241 = vpop.xlane.xlu0 %1240
        %v1242 = vmax.f32 %v1154, %v1156
        %1243 = vmax.xlane.f32.xlu0 %v1242
        %v1244 = vpop.xlane.xlu0 %1243
        %v1245 = vmax.f32 %v1160, %v1162
        %1246 = vmax.xlane.f32.xlu0 %v1245
        %v1247 = vpop.xlane.xlu0 %1246
        %v1248 = vmax.f32 %v1166, %v1168
        %1249 = vmax.xlane.f32.xlu0 %v1248
        %v1250 = vpop.xlane.xlu0 %1249
        %v1251 = vmax.f32 %v1172, %v1174
        %1252 = vmax.xlane.f32.xlu0 %v1251
        %v1253 = vpop.xlane.xlu0 %1252
        %v1254 = vmax.f32 %v1178, %v1180
        %1255 = vmax.xlane.f32.xlu0 %v1254
        %v1256 = vpop.xlane.xlu0 %1255
        %v1257 = vmax.f32 %v1184, %v1186
        %1258 = vmax.xlane.f32.xlu0 %v1257
        %v1259 = vpop.xlane.xlu0 %1258
        %v1260 = vmax.f32 %v1190, %v1192
        %1261 = vmax.xlane.f32.xlu0 %v1260
        %v1262 = vpop.xlane.xlu0 %1261
        %v1263 = vmax.f32 %v1196, %v1198
        %1264 = vmax.xlane.f32.xlu0 %v1263
        %v1265 = vpop.xlane.xlu0 %1264
        %v1266 = vmax.f32 %v1202, %v1204
        %1267 = vmax.xlane.f32.xlu0 %v1266
        %v1268 = vpop.xlane.xlu0 %1267
        %v1269 = vmax.f32 %v1208, %v1210
        %1270 = vmax.xlane.f32.xlu0 %v1269
        %v1271 = vpop.xlane.xlu0 %1270
        %v1272 = vmax.f32 %v1214, %v1216
        %1273 = vmax.xlane.f32.xlu0 %v1272
        %v1274 = vpop.xlane.xlu0 %1273
        %v1275 = vmax.f32 %v1220, %v1222
        %1276 = vmax.xlane.f32.xlu0 %v1275
        %v1277 = vpop.xlane.xlu0 %1276
        %v1278 = vmax.f32 %v1226, %v1228
        %1279 = vmax.xlane.f32.xlu0 %v1278
        %v1280 = vpop.xlane.xlu0 %1279
        %v1281 = vmax.f32 %v1232, %v1234
        %1282 = vmax.xlane.f32.xlu0 %v1281
        %v1283 = vpop.xlane.xlu0 %1282
        %v1284 = vsub.f32 %v1142, %v1238
        %v1285 = vsub.f32 %v1144, %v1238
        %v1286 = vsub.f32 %v1148, %v1241
        %v1287 = vsub.f32 %v1150, %v1241
        %v1288 = vsub.f32 %v1154, %v1244
        %v1289 = vsub.f32 %v1156, %v1244
        %v1290 = vsub.f32 %v1160, %v1247
        %v1291 = vsub.f32 %v1162, %v1247
        %v1292 = vsub.f32 %v1166, %v1250
        %v1293 = vsub.f32 %v1168, %v1250
        %v1294 = vsub.f32 %v1172, %v1253
        %v1295 = vsub.f32 %v1174, %v1253
        %v1296 = vsub.f32 %v1178, %v1256
        %v1297 = vsub.f32 %v1180, %v1256
        %v1298 = vsub.f32 %v1184, %v1259
        %v1299 = vsub.f32 %v1186, %v1259
        %v1300 = vsub.f32 %v1190, %v1262
        %v1301 = vsub.f32 %v1192, %v1262
        %v1302 = vsub.f32 %v1196, %v1265
        %v1303 = vsub.f32 %v1198, %v1265
        %v1304 = vsub.f32 %v1202, %v1268
        %v1305 = vsub.f32 %v1204, %v1268
        %v1306 = vsub.f32 %v1208, %v1271
        %v1307 = vsub.f32 %v1210, %v1271
        %v1308 = vsub.f32 %v1214, %v1274
        %v1309 = vsub.f32 %v1216, %v1274
        %v1310 = vsub.f32 %v1220, %v1277
        %v1311 = vsub.f32 %v1222, %v1277
        %v1312 = vsub.f32 %v1226, %v1280
        %v1313 = vsub.f32 %v1228, %v1280
        %v1314 = vsub.f32 %v1232, %v1283
        %v1315 = vsub.f32 %v1234, %v1283
        %v1316 = vmul.f32 %v1284, 1.442695
        %v1317 = vpow.pop %v1316
        %v1318 = vmul.f32 %v1285, 1.442695
        %v1319 = vpow.pop %v1318
        %v1320 = vmul.f32 %v1286, 1.442695
        %v1321 = vpow.pop %v1320
        %v1322 = vmul.f32 %v1287, 1.442695
        %v1323 = vpow.pop %v1322
        %v1324 = vmul.f32 %v1288, 1.442695
        %v1325 = vpow.pop %v1324
        %v1326 = vmul.f32 %v1289, 1.442695
        %v1327 = vpow.pop %v1326
        %v1328 = vmul.f32 %v1290, 1.442695
        %v1329 = vpow.pop %v1328
        %v1330 = vmul.f32 %v1291, 1.442695
        %v1331 = vpow.pop %v1330
        %v1332 = vmul.f32 %v1292, 1.442695
        %v1333 = vpow.pop %v1332
        %v1334 = vmul.f32 %v1293, 1.442695
        %v1335 = vpow.pop %v1334
        %v1336 = vmul.f32 %v1294, 1.442695
        %v1337 = vpow.pop %v1336
        %v1338 = vmul.f32 %v1295, 1.442695
        %v1339 = vpow.pop %v1338
        %v1340 = vmul.f32 %v1296, 1.442695
        %v1341 = vpow.pop %v1340
        %v1342 = vmul.f32 %v1297, 1.442695
        %v1343 = vpow.pop %v1342
        %v1344 = vmul.f32 %v1298, 1.442695
        %v1345 = vpow.pop %v1344
        %v1346 = vmul.f32 %v1299, 1.442695
        %v1347 = vpow.pop %v1346
        %v1348 = vmul.f32 %v1300, 1.442695
        %v1349 = vpow.pop %v1348
        %v1350 = vmul.f32 %v1301, 1.442695
        %v1351 = vpow.pop %v1350
        %v1352 = vmul.f32 %v1302, 1.442695
        %v1353 = vpow.pop %v1352
        %v1354 = vmul.f32 %v1303, 1.442695
        %v1355 = vpow.pop %v1354
        %v1356 = vmul.f32 %v1304, 1.442695
        %v1357 = vpow.pop %v1356
        %v1358 = vmul.f32 %v1305, 1.442695
        %v1359 = vpow.pop %v1358
        %v1360 = vmul.f32 %v1306, 1.442695
        %v1361 = vpow.pop %v1360
        %v1362 = vmul.f32 %v1307, 1.442695
        %v1363 = vpow.pop %v1362
        %v1364 = vmul.f32 %v1308, 1.442695
        %v1365 = vpow.pop %v1364
        %v1366 = vmul.f32 %v1309, 1.442695
        %v1367 = vpow.pop %v1366
        %v1368 = vmul.f32 %v1310, 1.442695
        %v1369 = vpow.pop %v1368
        %v1370 = vmul.f32 %v1311, 1.442695
        %v1371 = vpow.pop %v1370
        %v1372 = vmul.f32 %v1312, 1.442695
        %v1373 = vpow.pop %v1372
        %v1374 = vmul.f32 %v1313, 1.442695
        %v1375 = vpow.pop %v1374
        %v1376 = vmul.f32 %v1314, 1.442695
        %v1377 = vpow.pop %v1376
        %v1378 = vmul.f32 %v1315, 1.442695
        %v1379 = vpow.pop %v1378
        %v1380 = vadd.f32 %v1317, %v1319
        %1381 = vadd.xlane.f32.xlu0 %v1380
        %v1382 = vpop.xlane.xlu0 %1381
        %v1383 = vadd.f32 %v1321, %v1323
        %1384 = vadd.xlane.f32.xlu0 %v1383
        %v1385 = vpop.xlane.xlu0 %1384
        %v1386 = vadd.f32 %v1325, %v1327
        %1387 = vadd.xlane.f32.xlu0 %v1386
        %v1388 = vpop.xlane.xlu0 %1387
        %v1389 = vadd.f32 %v1329, %v1331
        %1390 = vadd.xlane.f32.xlu0 %v1389
        %v1391 = vpop.xlane.xlu0 %1390
        %v1392 = vadd.f32 %v1333, %v1335
        %1393 = vadd.xlane.f32.xlu0 %v1392
        %v1394 = vpop.xlane.xlu0 %1393
        %v1395 = vadd.f32 %v1337, %v1339
        %1396 = vadd.xlane.f32.xlu0 %v1395
        %v1397 = vpop.xlane.xlu0 %1396
        %v1398 = vadd.f32 %v1341, %v1343
        %1399 = vadd.xlane.f32.xlu0 %v1398
        %v1400 = vpop.xlane.xlu0 %1399
        %v1401 = vadd.f32 %v1345, %v1347
        %1402 = vadd.xlane.f32.xlu0 %v1401
        %v1403 = vpop.xlane.xlu0 %1402
        %v1404 = vadd.f32 %v1349, %v1351
        %1405 = vadd.xlane.f32.xlu0 %v1404
        %v1406 = vpop.xlane.xlu0 %1405
        %v1407 = vadd.f32 %v1353, %v1355
        %1408 = vadd.xlane.f32.xlu0 %v1407
        %v1409 = vpop.xlane.xlu0 %1408
        %v1410 = vadd.f32 %v1357, %v1359
        %1411 = vadd.xlane.f32.xlu0 %v1410
        %v1412 = vpop.xlane.xlu0 %1411
        %v1413 = vadd.f32 %v1361, %v1363
        %1414 = vadd.xlane.f32.xlu0 %v1413
        %v1415 = vpop.xlane.xlu0 %1414
        %v1416 = vadd.f32 %v1365, %v1367
        %1417 = vadd.xlane.f32.xlu0 %v1416
        %v1418 = vpop.xlane.xlu0 %1417
        %v1419 = vadd.f32 %v1369, %v1371
        %1420 = vadd.xlane.f32.xlu0 %v1419
        %v1421 = vpop.xlane.xlu0 %1420
        %v1422 = vadd.f32 %v1373, %v1375
        %1423 = vadd.xlane.f32.xlu0 %v1422
        %v1424 = vpop.xlane.xlu0 %1423
        %v1425 = vadd.f32 %v1377, %v1379
        %1426 = vadd.xlane.f32.xlu0 %v1425
        %v1427 = vpop.xlane.xlu0 %1426
        %v1428 = vrcp.pop %v1382
        %v1429 = vrcp.pop %v1385
        %v1430 = vrcp.pop %v1388
        %v1431 = vrcp.pop %v1391
        %v1432 = vrcp.pop %v1394
        %v1433 = vrcp.pop %v1397
        %v1434 = vrcp.pop %v1400
        %v1435 = vrcp.pop %v1403
        %v1436 = vrcp.pop %v1406
        %v1437 = vrcp.pop %v1409
        %v1438 = vrcp.pop %v1412
        %v1439 = vrcp.pop %v1415
        %v1440 = vrcp.pop %v1418
        %v1441 = vrcp.pop %v1421
        %v1442 = vrcp.pop %v1424
        %v1443 = vrcp.pop %v1427
        %v1444 = vmul.f32 %v1317, %v1428
        %v1445 = vmul.f32 %v1319, %v1428
        %v1446 = vmul.f32 %v1321, %v1429
        %v1447 = vmul.f32 %v1323, %v1429
        %v1448 = vmul.f32 %v1325, %v1430
        %v1449 = vmul.f32 %v1327, %v1430
        %v1450 = vmul.f32 %v1329, %v1431
        %v1451 = vmul.f32 %v1331, %v1431
        %v1452 = vmul.f32 %v1333, %v1432
        %v1453 = vmul.f32 %v1335, %v1432
        %v1454 = vmul.f32 %v1337, %v1433
        %v1455 = vmul.f32 %v1339, %v1433
        %v1456 = vmul.f32 %v1341, %v1434
        %v1457 = vmul.f32 %v1343, %v1434
        %v1458 = vmul.f32 %v1345, %v1435
        %v1459 = vmul.f32 %v1347, %v1435
        %v1460 = vmul.f32 %v1349, %v1436
        %v1461 = vmul.f32 %v1351, %v1436
        %v1462 = vmul.f32 %v1353, %v1437
        %v1463 = vmul.f32 %v1355, %v1437
        %v1464 = vmul.f32 %v1357, %v1438
        %v1465 = vmul.f32 %v1359, %v1438
        %v1466 = vmul.f32 %v1361, %v1439
        %v1467 = vmul.f32 %v1363, %v1439
        %v1468 = vmul.f32 %v1365, %v1440
        %v1469 = vmul.f32 %v1367, %v1440
        %v1470 = vmul.f32 %v1369, %v1441
        %v1471 = vmul.f32 %v1371, %v1441
        %v1472 = vmul.f32 %v1373, %v1442
        %v1473 = vmul.f32 %v1375, %v1442
        %v1474 = vmul.f32 %v1377, %v1443
        %v1475 = vmul.f32 %v1379, %v1443
        %1476 = vmatprep.subr.mxu0 %v1445
        %1477 = vmatpush1.xpose.msra.mxu0 %v1444
        %1478 = vmatprep.subr.mxu0 %v1447
        %1479 = vmatpush1.xpose.msra.mxu0 %v1446
        %1480 = vmatprep.subr.mxu0 %v1449
        %1481 = vmatpush1.xpose.msra.mxu0 %v1448
        %1482 = vmatprep.subr.mxu0 %v1451
        %1483 = vmatpush1.xpose.msra.mxu0 %v1450
        %1484 = vmatprep.subr.mxu0 %v1453
        %1485 = vmatpush1.xpose.msra.mxu0 %v1452
        %1486 = vmatprep.subr.mxu0 %v1455
        %1487 = vmatpush1.xpose.msra.mxu0 %v1454
        %1488 = vmatprep.subr.mxu0 %v1457
        %1489 = vmatpush1.xpose.msra.mxu0 %v1456
        %1490 = vmatprep.subr.mxu0 %v1459
        %1491 = vmatpush1.xpose.msra.mxu0 %v1458
        %1492 = vmatprep.subr.mxu0 %v1461
        %1493 = vmatpush1.xpose.msra.mxu0 %v1460
        %1494 = vmatprep.subr.mxu0 %v1463
        %1495 = vmatpush1.xpose.msra.mxu0 %v1462
        %1496 = vmatprep.subr.mxu0 %v1465
        %1497 = vmatpush1.xpose.msra.mxu0 %v1464
        %1498 = vmatprep.subr.mxu0 %v1467
        %1499 = vmatpush1.xpose.msra.mxu0 %v1466
        %1500 = vmatprep.subr.mxu0 %v1469
        %1501 = vmatpush1.xpose.msra.mxu0 %v1468
        %1502 = vmatprep.subr.mxu0 %v1471
        %1503 = vmatpush1.xpose.msra.mxu0 %v1470
        %1504 = vmatprep.subr.mxu0 %v1473
        %1505 = vmatpush1.xpose.msra.mxu0 %v1472
        %1506 = vmatprep.subr.mxu0 %v1475
        %1507 = vmatpush1.xpose.msra.mxu0 %v1474
        %1508 = vmatprep.subr.mxu0 0.0
        %1509 = vmatpush1.xpose.msra.mxu0 0.0
        %1510 = vmatprep.subr.mxu0 0.0
        %1511 = vmatpush1.xpose.msra.mxu0 0.0
        %1512 = vmatprep.subr.mxu0 0.0
        %1513 = vmatpush1.xpose.msra.mxu0 0.0
        %1514 = vmatprep.subr.mxu0 0.0
        %1515 = vmatpush1.xpose.msra.mxu0 0.0
        %1516 = vmatprep.subr.mxu0 0.0
        %1517 = vmatpush1.xpose.msra.mxu0 0.0
        %1518 = vmatprep.subr.mxu0 0.0
        %1519 = vmatpush1.xpose.msra.mxu0 0.0
        %1520 = vmatprep.subr.mxu0 0.0
        %1521 = vmatpush1.xpose.msra.mxu0 0.0
        %1522 = vmatprep.subr.mxu0 0.0
        %1523 = vmatpush1.xpose.msra.mxu0 0.0
        %1524 = vmatprep.subr.mxu0 0.0
        %1525 = vmatpush1.xpose.msra.mxu0 0.0
        %1526 = vmatprep.subr.mxu0 0.0
        %1527 = vmatpush1.xpose.msra.mxu0 0.0
        %1528 = vmatprep.subr.mxu0 0.0
        %1529 = vmatpush1.xpose.msra.mxu0 0.0
        %1530 = vmatprep.subr.mxu0 0.0
        %1531 = vmatpush1.xpose.msra.mxu0 0.0
        %1532 = vmatprep.subr.mxu0 0.0
        %1533 = vmatpush1.xpose.msra.mxu0 0.0
        %1534 = vmatprep.subr.mxu0 0.0
        %1535 = vmatpush1.xpose.msra.mxu0 0.0
        %1536 = vmatprep.subr.mxu0 0.0
        %1537 = vmatpush1.xpose.msra.mxu0 0.0
        %1538 = vmatprep.subr.mxu0 0.0
        %1539 = vmatpush1.xpose.msra.mxu0 0.0
        %1540 = vmatprep.mubr.f32.mxu0 %v425
        %1541 = vmatmul.mubr.f32.gmra.mrb[0].mxu0 %v423
        %v1542 = vpop.f32.mrb[0].mxu0
        %v1543 = vadd.f32 0.0, %v1542
        %v1544 = vpop.f32.mrb[0].mxu0
        %1545 = vdwg.mxu0
        %s1546 = sadd.s32 128, 128
        %s1547 = sshra.s32 %s1546, 7
        %s1548 = sand.u32 %s1546, 127
        %s1549 = smul.addr %s1547, 4
        %s1550 = scalar_lea.vmem [#allocation2], %s1549
        %1551 = vst [vmem:[%s1550] sm:$0xf] %v1543
        %v1552 = vld [vmem:[#allocation8] sm:$0xff]
        %v1553 = vld [vmem:[#allocation2] sm:$0xff]
        %v1554 = vld [vmem:[#allocation2 + $0x8] sm:$0xf]
        %1557 = vrot.lane.b32.xlu0 %v1553, 51
        %v1558 = vpop.permute.xlu0 %1557
        %1559 = vrot.lane.b32.xlu0 %v1554, 51
        %v1560 = vpop.permute.xlu0 %1559
        %v1561 = vrot.slane %v1558, 4
        %v1562 = vrot.slane %v1560, 4
        %v1563 = vsel %vm276, %v1561, %v1562
        %vm1564 = vcmask 416768
        %v1565 = vsel %vm1564, %v1558, %v1563
        %v1567 = vmul.f32 %v1552, %v1565
        %v1568 = vadd.f32 %v1567, 0.0
        %s1569 = scalar_lea.vmem [#allocation8], 8
        %v1570 = vld [vmem:[%s1569] sm:$0xff]
        %1571 = vrot.lane.b32.xlu0 %v1553, 50
        %v1572 = vpop.permute.xlu0 %1571
        %1573 = vrot.lane.b32.xlu0 %v1554, 50
        %v1574 = vpop.permute.xlu0 %1573
        %v1575 = vrot.slane %v1572, 4
        %v1576 = vrot.slane %v1574, 4
        %v1577 = vsel %vm276, %v1575, %v1576
        %vm1578 = vcmask 408576
        %v1579 = vsel %vm1578, %v1572, %v1577
        %v1581 = vmul.f32 %v1570, %v1579
        %v1582 = vadd.f32 %v1568, %v1581
        %s1583 = scalar_lea.vmem [#allocation8], 16
        %v1584 = vld [vmem:[%s1583] sm:$0xff]
        %1585 = vrot.lane.b32.xlu0 %v1553, 49
        %v1586 = vpop.permute.xlu0 %1585
        %1587 = vrot.lane.b32.xlu0 %v1554, 49
        %v1588 = vpop.permute.xlu0 %1587
        %v1589 = vrot.slane %v1586, 4
        %v1590 = vrot.slane %v1588, 4
        %v1591 = vsel %vm276, %v1589, %v1590
        %vm1592 = vcmask 400384
        %v1593 = vsel %vm1592, %v1586, %v1591
        %v1595 = vmul.f32 %v1584, %v1593
        %v1596 = vadd.f32 %v1582, %v1595
        %s1597 = scalar_lea.vmem [#allocation8], 24
        %v1598 = vld [vmem:[%s1597] sm:$0xff]
        %1599 = vrot.lane.b32.xlu0 %v1553, 48
        %v1600 = vpop.permute.xlu0 %1599
        %1601 = vrot.lane.b32.xlu0 %v1554, 48
        %v1602 = vpop.permute.xlu0 %1601
        %v1603 = vrot.slane %v1600, 4
        %v1604 = vrot.slane %v1602, 4
        %v1605 = vsel %vm276, %v1603, %v1604
        %vm1606 = vcmask 392192
        %v1607 = vsel %vm1606, %v1600, %v1605
        %v1609 = vmul.f32 %v1598, %v1607
        %v1610 = vadd.f32 %v1596, %v1609
        %s1611 = scalar_lea.vmem [#allocation8], 32
        %v1612 = vld [vmem:[%s1611] sm:$0xff]
        %1613 = vrot.lane.b32.xlu0 %v1553, 47
        %v1614 = vpop.permute.xlu0 %1613
        %1615 = vrot.lane.b32.xlu0 %v1554, 47
        %v1616 = vpop.permute.xlu0 %1615
        %v1617 = vrot.slane %v1614, 4
        %v1618 = vrot.slane %v1616, 4
        %v1619 = vsel %vm276, %v1617, %v1618
        %vm1620 = vcmask 384000
        %v1621 = vsel %vm1620, %v1614, %v1619
        %v1623 = vmul.f32 %v1612, %v1621
        %v1624 = vadd.f32 %v1610, %v1623
        %s1625 = scalar_lea.vmem [#allocation8], 40
        %v1626 = vld [vmem:[%s1625] sm:$0xff]
        %1627 = vrot.lane.b32.xlu0 %v1553, 46
        %v1628 = vpop.permute.xlu0 %1627
        %1629 = vrot.lane.b32.xlu0 %v1554, 46
        %v1630 = vpop.permute.xlu0 %1629
        %v1631 = vrot.slane %v1628, 4
        %v1632 = vrot.slane %v1630, 4
        %v1633 = vsel %vm276, %v1631, %v1632
        %vm1634 = vcmask 375808
        %v1635 = vsel %vm1634, %v1628, %v1633
        %v1637 = vmul.f32 %v1626, %v1635
        %v1638 = vadd.f32 %v1624, %v1637
        %s1639 = scalar_lea.vmem [#allocation8], 48
        %v1640 = vld [vmem:[%s1639] sm:$0xff]
        %1641 = vrot.lane.b32.xlu0 %v1553, 45
        %v1642 = vpop.permute.xlu0 %1641
        %1643 = vrot.lane.b32.xlu0 %v1554, 45
        %v1644 = vpop.permute.xlu0 %1643
        %v1645 = vrot.slane %v1642, 4
        %v1646 = vrot.slane %v1644, 4
        %v1647 = vsel %vm276, %v1645, %v1646
        %vm1648 = vcmask 367616
        %v1649 = vsel %vm1648, %v1642, %v1647
        %v1651 = vmul.f32 %v1640, %v1649
        %v1652 = vadd.f32 %v1638, %v1651
        %s1653 = scalar_lea.vmem [#allocation8], 56
        %v1654 = vld [vmem:[%s1653] sm:$0xff]
        %1655 = vrot.lane.b32.xlu0 %v1553, 35
        %v1656 = vpop.permute.xlu0 %1655
        %1657 = vrot.lane.b32.xlu0 %v1554, 35
        %v1658 = vpop.permute.xlu0 %1657
        %v1659 = vrot.slane %v1656, 4
        %v1660 = vrot.slane %v1658, 4
        %v1661 = vsel %vm276, %v1659, %v1660
        %vm1662 = vcmask 285696
        %v1663 = vsel %vm1662, %v1656, %v1661
        %v1665 = vmul.f32 %v1654, %v1663
        %v1666 = vadd.f32 %v1652, %v1665
        %s1667 = scalar_lea.vmem [#allocation8], 64
        %v1668 = vld [vmem:[%s1667] sm:$0xff]
        %1669 = vrot.lane.b32.xlu0 %v1553, 34
        %v1670 = vpop.permute.xlu0 %1669
        %1671 = vrot.lane.b32.xlu0 %v1554, 34
        %v1672 = vpop.permute.xlu0 %1671
        %v1673 = vrot.slane %v1670, 4
        %v1674 = vrot.slane %v1672, 4
        %v1675 = vsel %vm276, %v1673, %v1674
        %vm1676 = vcmask 277504
        %v1677 = vsel %vm1676, %v1670, %v1675
        %v1679 = vmul.f32 %v1668, %v1677
        %v1680 = vadd.f32 %v1666, %v1679
        %s1681 = scalar_lea.vmem [#allocation8], 72
        %v1682 = vld [vmem:[%s1681] sm:$0xff]
        %1683 = vrot.lane.b32.xlu0 %v1553, 33
        %v1684 = vpop.permute.xlu0 %1683
        %1685 = vrot.lane.b32.xlu0 %v1554, 33
        %v1686 = vpop.permute.xlu0 %1685
        %v1687 = vrot.slane %v1684, 4
        %v1688 = vrot.slane %v1686, 4
        %v1689 = vsel %vm276, %v1687, %v1688
        %vm1690 = vcmask 269312
        %v1691 = vsel %vm1690, %v1684, %v1689
        %v1693 = vmul.f32 %v1682, %v1691
        %v1694 = vadd.f32 %v1680, %v1693
        %s1695 = scalar_lea.vmem [#allocation8], 80
        %v1696 = vld [vmem:[%s1695] sm:$0xff]
        %1697 = vrot.lane.b32.xlu0 %v1553, 32
        %v1698 = vpop.permute.xlu0 %1697
        %1699 = vrot.lane.b32.xlu0 %v1554, 32
        %v1700 = vpop.permute.xlu0 %1699
        %v1701 = vrot.slane %v1698, 4
        %v1702 = vrot.slane %v1700, 4
        %v1703 = vsel %vm276, %v1701, %v1702
        %vm1704 = vcmask 261120
        %v1705 = vsel %vm1704, %v1698, %v1703
        %v1707 = vmul.f32 %v1696, %v1705
        %v1708 = vadd.f32 %v1694, %v1707
        %s1709 = scalar_lea.vmem [#allocation8], 88
        %v1710 = vld [vmem:[%s1709] sm:$0xff]
        %1711 = vrot.lane.b32.xlu0 %v1553, 31
        %v1712 = vpop.permute.xlu0 %1711
        %1713 = vrot.lane.b32.xlu0 %v1554, 31
        %v1714 = vpop.permute.xlu0 %1713
        %v1715 = vrot.slane %v1712, 4
        %v1716 = vrot.slane %v1714, 4
        %v1717 = vsel %vm276, %v1715, %v1716
        %vm1718 = vcmask 252928
        %v1719 = vsel %vm1718, %v1712, %v1717
        %v1721 = vmul.f32 %v1710, %v1719
        %v1722 = vadd.f32 %v1708, %v1721
        %s1723 = scalar_lea.vmem [#allocation8], 96
        %v1724 = vld [vmem:[%s1723] sm:$0xff]
        %1725 = vrot.lane.b32.xlu0 %v1553, 30
        %v1726 = vpop.permute.xlu0 %1725
        %1727 = vrot.lane.b32.xlu0 %v1554, 30
        %v1728 = vpop.permute.xlu0 %1727
        %v1729 = vrot.slane %v1726, 4
        %v1730 = vrot.slane %v1728, 4
        %v1731 = vsel %vm276, %v1729, %v1730
        %vm1732 = vcmask 244736
        %v1733 = vsel %vm1732, %v1726, %v1731
        %v1735 = vmul.f32 %v1724, %v1733
        %v1736 = vadd.f32 %v1722, %v1735
        %s1737 = scalar_lea.vmem [#allocation8], 104
        %v1738 = vld [vmem:[%s1737] sm:$0xff]
        %1739 = vrot.lane.b32.xlu0 %v1553, 29
        %v1740 = vpop.permute.xlu0 %1739
        %1741 = vrot.lane.b32.xlu0 %v1554, 29
        %v1742 = vpop.permute.xlu0 %1741
        %v1743 = vrot.slane %v1740, 4
        %v1744 = vrot.slane %v1742, 4
        %v1745 = vsel %vm276, %v1743, %v1744
        %vm1746 = vcmask 236544
        %v1747 = vsel %vm1746, %v1740, %v1745
        %v1749 = vmul.f32 %v1738, %v1747
        %v1750 = vadd.f32 %v1736, %v1749
        %s1751 = scalar_lea.vmem [#allocation8], 112
        %v1752 = vld [vmem:[%s1751] sm:$0xff]
        %1753 = vrot.lane.b32.xlu0 %v1553, 19
        %v1754 = vpop.permute.xlu0 %1753
        %1755 = vrot.lane.b32.xlu0 %v1554, 19
        %v1756 = vpop.permute.xlu0 %1755
        %v1757 = vrot.slane %v1754, 4
        %v1758 = vrot.slane %v1756, 4
        %v1759 = vsel %vm276, %v1757, %v1758
        %vm1760 = vcmask 154624
        %v1761 = vsel %vm1760, %v1754, %v1759
        %v1763 = vmul.f32 %v1752, %v1761
        %v1764 = vadd.f32 %v1750, %v1763
        %s1765 = scalar_lea.vmem [#allocation8], 120
        %v1766 = vld [vmem:[%s1765] sm:$0xff]
        %1767 = vrot.lane.b32.xlu0 %v1553, 18
        %v1768 = vpop.permute.xlu0 %1767
        %1769 = vrot.lane.b32.xlu0 %v1554, 18
        %v1770 = vpop.permute.xlu0 %1769
        %v1771 = vrot.slane %v1768, 4
        %v1772 = vrot.slane %v1770, 4
        %v1773 = vsel %vm276, %v1771, %v1772
        %vm1774 = vcmask 146432
        %v1775 = vsel %vm1774, %v1768, %v1773
        %v1777 = vmul.f32 %v1766, %v1775
        %v1778 = vadd.f32 %v1764, %v1777
        %s1779 = scalar_lea.vmem [#allocation8], 128
        %v1780 = vld [vmem:[%s1779] sm:$0xff]
        %1781 = vrot.lane.b32.xlu0 %v1553, 17
        %v1782 = vpop.permute.xlu0 %1781
        %1783 = vrot.lane.b32.xlu0 %v1554, 17
        %v1784 = vpop.permute.xlu0 %1783
        %v1785 = vrot.slane %v1782, 4
        %v1786 = vrot.slane %v1784, 4
        %v1787 = vsel %vm276, %v1785, %v1786
        %vm1788 = vcmask 138240
        %v1789 = vsel %vm1788, %v1782, %v1787
        %v1791 = vmul.f32 %v1780, %v1789
        %v1792 = vadd.f32 %v1778, %v1791
        %s1793 = scalar_lea.vmem [#allocation8], 136
        %v1794 = vld [vmem:[%s1793] sm:$0xff]
        %1795 = vrot.lane.b32.xlu0 %v1553, 16
        %v1796 = vpop.permute.xlu0 %1795
        %1797 = vrot.lane.b32.xlu0 %v1554, 16
        %v1798 = vpop.permute.xlu0 %1797
        %v1799 = vrot.slane %v1796, 4
        %v1800 = vrot.slane %v1798, 4
        %v1801 = vsel %vm276, %v1799, %v1800
        %vm1802 = vcmask 130048
        %v1803 = vsel %vm1802, %v1796, %v1801
        %v1805 = vmul.f32 %v1794, %v1803
        %v1806 = vadd.f32 %v1792, %v1805
        %s1807 = scalar_lea.vmem [#allocation8], 144
        %v1808 = vld [vmem:[%s1807] sm:$0xff]
        %1809 = vrot.lane.b32.xlu0 %v1553, 15
        %v1810 = vpop.permute.xlu0 %1809
        %1811 = vrot.lane.b32.xlu0 %v1554, 15
        %v1812 = vpop.permute.xlu0 %1811
        %v1813 = vrot.slane %v1810, 4
        %v1814 = vrot.slane %v1812, 4
        %v1815 = vsel %vm276, %v1813, %v1814
        %vm1816 = vcmask 121856
        %v1817 = vsel %vm1816, %v1810, %v1815
        %v1819 = vmul.f32 %v1808, %v1817
        %v1820 = vadd.f32 %v1806, %v1819
        %s1821 = scalar_lea.vmem [#allocation8], 152
        %v1822 = vld [vmem:[%s1821] sm:$0xff]
        %1823 = vrot.lane.b32.xlu0 %v1553, 14
        %v1824 = vpop.permute.xlu0 %1823
        %1825 = vrot.lane.b32.xlu0 %v1554, 14
        %v1826 = vpop.permute.xlu0 %1825
        %v1827 = vrot.slane %v1824, 4
        %v1828 = vrot.slane %v1826, 4
        %v1829 = vsel %vm276, %v1827, %v1828
        %vm1830 = vcmask 113664
        %v1831 = vsel %vm1830, %v1824, %v1829
        %v1833 = vmul.f32 %v1822, %v1831
        %v1834 = vadd.f32 %v1820, %v1833
        %s1835 = scalar_lea.vmem [#allocation8], 160
        %v1836 = vld [vmem:[%s1835] sm:$0xff]
        %1837 = vrot.lane.b32.xlu0 %v1553, 13
        %v1838 = vpop.permute.xlu0 %1837
        %1839 = vrot.lane.b32.xlu0 %v1554, 13
        %v1840 = vpop.permute.xlu0 %1839
        %v1841 = vrot.slane %v1838, 4
        %v1842 = vrot.slane %v1840, 4
        %v1843 = vsel %vm276, %v1841, %v1842
        %vm1844 = vcmask 105472
        %v1845 = vsel %vm1844, %v1838, %v1843
        %v1847 = vmul.f32 %v1836, %v1845
        %v1848 = vadd.f32 %v1834, %v1847
        %s1849 = scalar_lea.vmem [#allocation8], 168
        %v1850 = vld [vmem:[%s1849] sm:$0xff]
        %1851 = vrot.lane.b32.xlu0 %v1553, 3
        %v1852 = vpop.permute.xlu0 %1851
        %1853 = vrot.lane.b32.xlu0 %v1554, 3
        %v1854 = vpop.permute.xlu0 %1853
        %v1855 = vrot.slane %v1852, 4
        %v1856 = vrot.slane %v1854, 4
        %v1857 = vsel %vm276, %v1855, %v1856
        %vm1858 = vcmask 23552
        %v1859 = vsel %vm1858, %v1852, %v1857
        %v1861 = vmul.f32 %v1850, %v1859
        %v1862 = vadd.f32 %v1848, %v1861
        %s1863 = scalar_lea.vmem [#allocation8], 176
        %v1864 = vld [vmem:[%s1863] sm:$0xff]
        %1865 = vrot.lane.b32.xlu0 %v1553, 2
        %v1866 = vpop.permute.xlu0 %1865
        %1867 = vrot.lane.b32.xlu0 %v1554, 2
        %v1868 = vpop.permute.xlu0 %1867
        %v1869 = vrot.slane %v1866, 4
        %v1870 = vrot.slane %v1868, 4
        %v1871 = vsel %vm276, %v1869, %v1870
        %vm1872 = vcmask 15360
        %v1873 = vsel %vm1872, %v1866, %v1871
        %v1875 = vmul.f32 %v1864, %v1873
        %v1876 = vadd.f32 %v1862, %v1875
        %s1877 = scalar_lea.vmem [#allocation8], 184
        %v1878 = vld [vmem:[%s1877] sm:$0xff]
        %1879 = vrot.lane.b32.xlu0 %v1553, 1
        %v1880 = vpop.permute.xlu0 %1879
        %1881 = vrot.lane.b32.xlu0 %v1554, 1
        %v1882 = vpop.permute.xlu0 %1881
        %v1883 = vrot.slane %v1880, 4
        %v1884 = vrot.slane %v1882, 4
        %v1885 = vsel %vm276, %v1883, %v1884
        %vm1886 = vcmask 7168
        %v1887 = vsel %vm1886, %v1880, %v1885
        %v1889 = vmul.f32 %v1878, %v1887
        %v1890 = vadd.f32 %v1876, %v1889
        %s1891 = scalar_lea.vmem [#allocation8], 192
        %v1892 = vld [vmem:[%s1891] sm:$0xff]
        %v1893 = vld [vmem:[#allocation2 + $0x4] sm:$0xff]
        %v1894 = vmul.f32 %v1892, %v1893
        %v1895 = vadd.f32 %v1890, %v1894
        %s1896 = scalar_lea.vmem [#allocation8], 200
        %v1897 = vld [vmem:[%s1896] sm:$0xff]
        %v1898 = vld [vmem:[#allocation2 + $0x4] sm:$0xff]
        %v1899 = vld [vmem:[#allocation2 + $0xc] sm:$0xf]
        %1902 = vrot.lane.b32.xlu0 %v1898, 127
        %v1903 = vpop.permute.xlu0 %1902
        %1904 = vrot.lane.b32.xlu0 %v1899, 127
        %v1905 = vpop.permute.xlu0 %1904
        %v1906 = vrot.slane %v1903, 4
        %v1907 = vrot.slane %v1905, 4
        %v1908 = vsel %vm276, %v1906, %v1907
        %vm1909 = vcmask 1039360
        %v1910 = vsel %vm1909, %v1903, %v1908
        %v1912 = vmul.f32 %v1897, %v1910
        %v1913 = vadd.f32 %v1895, %v1912
        %s1914 = scalar_lea.vmem [#allocation8], 208
        %v1915 = vld [vmem:[%s1914] sm:$0xff]
        %1916 = vrot.lane.b32.xlu0 %v1898, 126
        %v1917 = vpop.permute.xlu0 %1916
        %1918 = vrot.lane.b32.xlu0 %v1899, 126
        %v1919 = vpop.permute.xlu0 %1918
        %v1920 = vrot.slane %v1917, 4
        %v1921 = vrot.slane %v1919, 4
        %v1922 = vsel %vm276, %v1920, %v1921
        %vm1923 = vcmask 1031168
        %v1924 = vsel %vm1923, %v1917, %v1922
        %v1926 = vmul.f32 %v1915, %v1924
        %v1927 = vadd.f32 %v1913, %v1926
        %s1928 = scalar_lea.vmem [#allocation8], 216
        %v1929 = vld [vmem:[%s1928] sm:$0xff]
        %1930 = vrot.lane.b32.xlu0 %v1898, 125
        %v1931 = vpop.permute.xlu0 %1930
        %1932 = vrot.lane.b32.xlu0 %v1899, 125
        %v1933 = vpop.permute.xlu0 %1932
        %v1934 = vrot.slane %v1931, 4
        %v1935 = vrot.slane %v1933, 4
        %v1936 = vsel %vm276, %v1934, %v1935
        %vm1937 = vcmask 1022976
        %v1938 = vsel %vm1937, %v1931, %v1936
        %v1940 = vmul.f32 %v1929, %v1938
        %v1941 = vadd.f32 %v1927, %v1940
        %s1942 = scalar_lea.vmem [#allocation8], 224
        %v1943 = vld [vmem:[%s1942] sm:$0xff]
        %1944 = vrot.lane.b32.xlu0 %v1898, 115
        %v1945 = vpop.permute.xlu0 %1944
        %1946 = vrot.lane.b32.xlu0 %v1899, 115
        %v1947 = vpop.permute.xlu0 %1946
        %v1948 = vrot.slane %v1945, 4
        %v1949 = vrot.slane %v1947, 4
        %v1950 = vsel %vm276, %v1948, %v1949
        %vm1951 = vcmask 941056
        %v1952 = vsel %vm1951, %v1945, %v1950
        %v1954 = vmul.f32 %v1943, %v1952
        %v1955 = vadd.f32 %v1941, %v1954
        %s1956 = scalar_lea.vmem [#allocation8], 232
        %v1957 = vld [vmem:[%s1956] sm:$0xff]
        %1958 = vrot.lane.b32.xlu0 %v1898, 114
        %v1959 = vpop.permute.xlu0 %1958
        %1960 = vrot.lane.b32.xlu0 %v1899, 114
        %v1961 = vpop.permute.xlu0 %1960
        %v1962 = vrot.slane %v1959, 4
        %v1963 = vrot.slane %v1961, 4
        %v1964 = vsel %vm276, %v1962, %v1963
        %vm1965 = vcmask 932864
        %v1966 = vsel %vm1965, %v1959, %v1964
        %v1968 = vmul.f32 %v1957, %v1966
        %v1969 = vadd.f32 %v1955, %v1968
        %s1970 = scalar_lea.vmem [#allocation8], 240
        %v1971 = vld [vmem:[%s1970] sm:$0xff]
        %1972 = vrot.lane.b32.xlu0 %v1898, 113
        %v1973 = vpop.permute.xlu0 %1972
        %1974 = vrot.lane.b32.xlu0 %v1899, 113
        %v1975 = vpop.permute.xlu0 %1974
        %v1976 = vrot.slane %v1973, 4
        %v1977 = vrot.slane %v1975, 4
        %v1978 = vsel %vm276, %v1976, %v1977
        %vm1979 = vcmask 924672
        %v1980 = vsel %vm1979, %v1973, %v1978
        %v1982 = vmul.f32 %v1971, %v1980
        %v1983 = vadd.f32 %v1969, %v1982
        %s1984 = scalar_lea.vmem [#allocation8], 248
        %v1985 = vld [vmem:[%s1984] sm:$0xff]
        %1986 = vrot.lane.b32.xlu0 %v1898, 112
        %v1987 = vpop.permute.xlu0 %1986
        %1988 = vrot.lane.b32.xlu0 %v1899, 112
        %v1989 = vpop.permute.xlu0 %1988
        %v1990 = vrot.slane %v1987, 4
        %v1991 = vrot.slane %v1989, 4
        %v1992 = vsel %vm276, %v1990, %v1991
        %vm1993 = vcmask 916480
        %v1994 = vsel %vm1993, %v1987, %v1992
        %v1996 = vmul.f32 %v1985, %v1994
        %v1997 = vadd.f32 %v1983, %v1996
        %s1998 = scalar_lea.vmem [#allocation8], 256
        %v1999 = vld [vmem:[%s1998] sm:$0xff]
        %2000 = vrot.lane.b32.xlu0 %v1898, 111
        %v2001 = vpop.permute.xlu0 %2000
        %2002 = vrot.lane.b32.xlu0 %v1899, 111
        %v2003 = vpop.permute.xlu0 %2002
        %v2004 = vrot.slane %v2001, 4
        %v2005 = vrot.slane %v2003, 4
        %v2006 = vsel %vm276, %v2004, %v2005
        %vm2007 = vcmask 908288
        %v2008 = vsel %vm2007, %v2001, %v2006
        %v2010 = vmul.f32 %v1999, %v2008
        %v2011 = vadd.f32 %v1997, %v2010
        %s2012 = scalar_lea.vmem [#allocation8], 264
        %v2013 = vld [vmem:[%s2012] sm:$0xff]
        %2014 = vrot.lane.b32.xlu0 %v1898, 110
        %v2015 = vpop.permute.xlu0 %2014
        %2016 = vrot.lane.b32.xlu0 %v1899, 110
        %v2017 = vpop.permute.xlu0 %2016
        %v2018 = vrot.slane %v2015, 4
        %v2019 = vrot.slane %v2017, 4
        %v2020 = vsel %vm276, %v2018, %v2019
        %vm2021 = vcmask 900096
        %v2022 = vsel %vm2021, %v2015, %v2020
        %v2024 = vmul.f32 %v2013, %v2022
        %v2025 = vadd.f32 %v2011, %v2024
        %s2026 = scalar_lea.vmem [#allocation8], 272
        %v2027 = vld [vmem:[%s2026] sm:$0xff]
        %2028 = vrot.lane.b32.xlu0 %v1898, 109
        %v2029 = vpop.permute.xlu0 %2028
        %2030 = vrot.lane.b32.xlu0 %v1899, 109
        %v2031 = vpop.permute.xlu0 %2030
        %v2032 = vrot.slane %v2029, 4
        %v2033 = vrot.slane %v2031, 4
        %v2034 = vsel %vm276, %v2032, %v2033
        %vm2035 = vcmask 891904
        %v2036 = vsel %vm2035, %v2029, %v2034
        %v2038 = vmul.f32 %v2027, %v2036
        %v2039 = vadd.f32 %v2025, %v2038
        %s2040 = scalar_lea.vmem [#allocation8], 280
        %v2041 = vld [vmem:[%s2040] sm:$0xff]
        %2042 = vrot.lane.b32.xlu0 %v1898, 99
        %v2043 = vpop.permute.xlu0 %2042
        %2044 = vrot.lane.b32.xlu0 %v1899, 99
        %v2045 = vpop.permute.xlu0 %2044
        %v2046 = vrot.slane %v2043, 4
        %v2047 = vrot.slane %v2045, 4
        %v2048 = vsel %vm276, %v2046, %v2047
        %vm2049 = vcmask 809984
        %v2050 = vsel %vm2049, %v2043, %v2048
        %v2052 = vmul.f32 %v2041, %v2050
        %v2053 = vadd.f32 %v2039, %v2052
        %s2054 = scalar_lea.vmem [#allocation8], 288
        %v2055 = vld [vmem:[%s2054] sm:$0xff]
        %2056 = vrot.lane.b32.xlu0 %v1898, 98
        %v2057 = vpop.permute.xlu0 %2056
        %2058 = vrot.lane.b32.xlu0 %v1899, 98
        %v2059 = vpop.permute.xlu0 %2058
        %v2060 = vrot.slane %v2057, 4
        %v2061 = vrot.slane %v2059, 4
        %v2062 = vsel %vm276, %v2060, %v2061
        %vm2063 = vcmask 801792
        %v2064 = vsel %vm2063, %v2057, %v2062
        %v2066 = vmul.f32 %v2055, %v2064
        %v2067 = vadd.f32 %v2053, %v2066
        %s2068 = scalar_lea.vmem [#allocation8], 296
        %v2069 = vld [vmem:[%s2068] sm:$0xff]
        %2070 = vrot.lane.b32.xlu0 %v1898, 97
        %v2071 = vpop.permute.xlu0 %2070
        %2072 = vrot.lane.b32.xlu0 %v1899, 97
        %v2073 = vpop.permute.xlu0 %2072
        %v2074 = vrot.slane %v2071, 4
        %v2075 = vrot.slane %v2073, 4
        %v2076 = vsel %vm276, %v2074, %v2075
        %vm2077 = vcmask 793600
        %v2078 = vsel %vm2077, %v2071, %v2076
        %v2080 = vmul.f32 %v2069, %v2078
        %v2081 = vadd.f32 %v2067, %v2080
        %s2082 = scalar_lea.vmem [#allocation8], 304
        %v2083 = vld [vmem:[%s2082] sm:$0xff]
        %2084 = vrot.lane.b32.xlu0 %v1898, 96
        %v2085 = vpop.permute.xlu0 %2084
        %2086 = vrot.lane.b32.xlu0 %v1899, 96
        %v2087 = vpop.permute.xlu0 %2086
        %v2088 = vrot.slane %v2085, 4
        %v2089 = vrot.slane %v2087, 4
        %v2090 = vsel %vm276, %v2088, %v2089
        %vm2091 = vcmask 785408
        %v2092 = vsel %vm2091, %v2085, %v2090
        %v2094 = vmul.f32 %v2083, %v2092
        %v2095 = vadd.f32 %v2081, %v2094
        %s2096 = scalar_lea.vmem [#allocation8], 312
        %v2097 = vld [vmem:[%s2096] sm:$0xff]
        %2098 = vrot.lane.b32.xlu0 %v1898, 95
        %v2099 = vpop.permute.xlu0 %2098
        %2100 = vrot.lane.b32.xlu0 %v1899, 95
        %v2101 = vpop.permute.xlu0 %2100
        %v2102 = vrot.slane %v2099, 4
        %v2103 = vrot.slane %v2101, 4
        %v2104 = vsel %vm276, %v2102, %v2103
        %vm2105 = vcmask 777216
        %v2106 = vsel %vm2105, %v2099, %v2104
        %v2108 = vmul.f32 %v2097, %v2106
        %v2109 = vadd.f32 %v2095, %v2108
        %s2110 = scalar_lea.vmem [#allocation8], 320
        %v2111 = vld [vmem:[%s2110] sm:$0xff]
        %2112 = vrot.lane.b32.xlu0 %v1898, 94
        %v2113 = vpop.permute.xlu0 %2112
        %2114 = vrot.lane.b32.xlu0 %v1899, 94
        %v2115 = vpop.permute.xlu0 %2114
        %v2116 = vrot.slane %v2113, 4
        %v2117 = vrot.slane %v2115, 4
        %v2118 = vsel %vm276, %v2116, %v2117
        %vm2119 = vcmask 769024
        %v2120 = vsel %vm2119, %v2113, %v2118
        %v2122 = vmul.f32 %v2111, %v2120
        %v2123 = vadd.f32 %v2109, %v2122
        %s2124 = scalar_lea.vmem [#allocation8], 328
        %v2125 = vld [vmem:[%s2124] sm:$0xff]
        %2126 = vrot.lane.b32.xlu0 %v1898, 93
        %v2127 = vpop.permute.xlu0 %2126
        %2128 = vrot.lane.b32.xlu0 %v1899, 93
        %v2129 = vpop.permute.xlu0 %2128
        %v2130 = vrot.slane %v2127, 4
        %v2131 = vrot.slane %v2129, 4
        %v2132 = vsel %vm276, %v2130, %v2131
        %vm2133 = vcmask 760832
        %v2134 = vsel %vm2133, %v2127, %v2132
        %v2136 = vmul.f32 %v2125, %v2134
        %v2137 = vadd.f32 %v2123, %v2136
        %s2138 = scalar_lea.vmem [#allocation8], 336
        %v2139 = vld [vmem:[%s2138] sm:$0xff]
        %2140 = vrot.lane.b32.xlu0 %v1898, 83
        %v2141 = vpop.permute.xlu0 %2140
        %2142 = vrot.lane.b32.xlu0 %v1899, 83
        %v2143 = vpop.permute.xlu0 %2142
        %v2144 = vrot.slane %v2141, 4
        %v2145 = vrot.slane %v2143, 4
        %v2146 = vsel %vm276, %v2144, %v2145
        %vm2147 = vcmask 678912
        %v2148 = vsel %vm2147, %v2141, %v2146
        %v2150 = vmul.f32 %v2139, %v2148
        %v2151 = vadd.f32 %v2137, %v2150
        %s2152 = scalar_lea.vmem [#allocation8], 344
        %v2153 = vld [vmem:[%s2152] sm:$0xff]
        %2154 = vrot.lane.b32.xlu0 %v1898, 82
        %v2155 = vpop.permute.xlu0 %2154
        %2156 = vrot.lane.b32.xlu0 %v1899, 82
        %v2157 = vpop.permute.xlu0 %2156
        %v2158 = vrot.slane %v2155, 4
        %v2159 = vrot.slane %v2157, 4
        %v2160 = vsel %vm276, %v2158, %v2159
        %vm2161 = vcmask 670720
        %v2162 = vsel %vm2161, %v2155, %v2160
        %v2164 = vmul.f32 %v2153, %v2162
        %v2165 = vadd.f32 %v2151, %v2164
        %s2166 = scalar_lea.vmem [#allocation8], 352
        %v2167 = vld [vmem:[%s2166] sm:$0xff]
        %2168 = vrot.lane.b32.xlu0 %v1898, 81
        %v2169 = vpop.permute.xlu0 %2168
        %2170 = vrot.lane.b32.xlu0 %v1899, 81
        %v2171 = vpop.permute.xlu0 %2170
        %v2172 = vrot.slane %v2169, 4
        %v2173 = vrot.slane %v2171, 4
        %v2174 = vsel %vm276, %v2172, %v2173
        %vm2175 = vcmask 662528
        %v2176 = vsel %vm2175, %v2169, %v2174
        %v2178 = vmul.f32 %v2167, %v2176
        %v2179 = vadd.f32 %v2165, %v2178
        %s2180 = scalar_lea.vmem [#allocation8], 360
        %v2181 = vld [vmem:[%s2180] sm:$0xff]
        %2182 = vrot.lane.b32.xlu0 %v1898, 80
        %v2183 = vpop.permute.xlu0 %2182
        %2184 = vrot.lane.b32.xlu0 %v1899, 80
        %v2185 = vpop.permute.xlu0 %2184
        %v2186 = vrot.slane %v2183, 4
        %v2187 = vrot.slane %v2185, 4
        %v2188 = vsel %vm276, %v2186, %v2187
        %vm2189 = vcmask 654336
        %v2190 = vsel %vm2189, %v2183, %v2188
        %v2192 = vmul.f32 %v2181, %v2190
        %v2193 = vadd.f32 %v2179, %v2192
        %s2194 = scalar_lea.vmem [#allocation8], 368
        %v2195 = vld [vmem:[%s2194] sm:$0xff]
        %2196 = vrot.lane.b32.xlu0 %v1898, 79
        %v2197 = vpop.permute.xlu0 %2196
        %2198 = vrot.lane.b32.xlu0 %v1899, 79
        %v2199 = vpop.permute.xlu0 %2198
        %v2200 = vrot.slane %v2197, 4
        %v2201 = vrot.slane %v2199, 4
        %v2202 = vsel %vm276, %v2200, %v2201
        %vm2203 = vcmask 646144
        %v2204 = vsel %vm2203, %v2197, %v2202
        %v2206 = vmul.f32 %v2195, %v2204
        %v2207 = vadd.f32 %v2193, %v2206
        %s2208 = scalar_lea.vmem [#allocation8], 376
        %v2209 = vld [vmem:[%s2208] sm:$0xff]
        %2210 = vrot.lane.b32.xlu0 %v1898, 78
        %v2211 = vpop.permute.xlu0 %2210
        %2212 = vrot.lane.b32.xlu0 %v1899, 78
        %v2213 = vpop.permute.xlu0 %2212
        %v2214 = vrot.slane %v2211, 4
        %v2215 = vrot.slane %v2213, 4
        %v2216 = vsel %vm276, %v2214, %v2215
        %vm2217 = vcmask 637952
        %v2218 = vsel %vm2217, %v2211, %v2216
        %v2220 = vmul.f32 %v2209, %v2218
        %v2221 = vadd.f32 %v2207, %v2220
        %s2222 = scalar_lea.vmem [#allocation8], 384
        %v2223 = vld [vmem:[%s2222] sm:$0xff]
        %2224 = vrot.lane.b32.xlu0 %v1898, 77
        %v2225 = vpop.permute.xlu0 %2224
        %2226 = vrot.lane.b32.xlu0 %v1899, 77
        %v2227 = vpop.permute.xlu0 %2226
        %v2228 = vrot.slane %v2225, 4
        %v2229 = vrot.slane %v2227, 4
        %v2230 = vsel %vm276, %v2228, %v2229
        %vm2231 = vcmask 629760
        %v2232 = vsel %vm2231, %v2225, %v2230
        %v2234 = vmul.f32 %v2223, %v2232
        %v2235 = vadd.f32 %v2221, %v2234
        %v2237 = vcombine.high %v2235, %v2235
        %v2239 = vsel %vm276, %v2235, 0.0
        %v2240 = vrot.slane %v2239, 4
        %v2241 = vadd.f32 %v2239, %v2240
        %v2242 = vrot.slane %v2241, 2
        %v2243 = vadd.f32 %v2241, %v2242
        %v2244 = vrot.slane %v2243, 1
        %v2245 = vadd.f32 %v2243, %v2244
        %v2246 = vsel %vm276, %v2237, 0.0
        %v2247 = vrot.slane %v2246, 4
        %v2248 = vadd.f32 %v2246, %v2247
        %v2249 = vrot.slane %v2248, 2
        %v2250 = vadd.f32 %v2248, %v2249
        %v2251 = vrot.slane %v2250, 1
        %v2252 = vadd.f32 %v2250, %v2251
        %v2253 = vld [vmem:[%s4] sm:$0x3]
        %v2255 = vlaneseq
        %v2256 = vshrl.u32 %v2255, 7
        %v2257 = vsub.s32 0, %v2256
        %v2258 = vrot.slane %v2253, %v2257
        %v2259 = vlaneseq
        %v2260 = vshrl.u32 %v2259, 7
        %v2261 = vsub.s32 1, %v2260
        %v2262 = vrot.slane %v2253, %v2261
        %v2265 = vadd.f32 %v2245, %v2258
        %v2266 = vadd.f32 %v2252, %v2262
        %v2267 = vxor.u32 %v2265, 2147483648
        %v2268 = vxor.u32 %v2266, 2147483648
        %v2269 = vmul.f32 %v2267, 1.442695
        %v2270 = vpow.pop %v2269
        %v2271 = vmul.f32 %v2268, 1.442695
        %v2272 = vpow.pop %v2271
        %v2273 = vadd.f32 %v2270, 1.0
        %v2274 = vadd.f32 %v2272, 1.0
        %v2275 = vrcp.pop %v2273
        %v2276 = vmul.f32 1.0, %v2275
        %v2277 = vrcp.pop %v2274
        %v2278 = vmul.f32 1.0, %v2277
        %v2279 = vlaneseq
        %v2280 = vshrl.u32 %v2279, 7
        %v2281 = vsub.s32 0, %v2280
        %v2282 = vrot.slane %v2276, %v2281
        %v2283 = vlaneseq
        %v2284 = vshrl.u32 %v2283, 7
        %v2285 = vsub.s32 0, %v2284
        %v2286 = vrot.slane %v2278, %v2285
        %v2288 = vmul.f32 %v2282, %v268
        %v2289 = vmul.f32 %v2286, %v271
        %v2292 = vcombine.low %v2288, %v2289
        %2294 = vst [vmem:[%s267] sm:$0xff] %v2292
        %s2295 = sand.u32 %s141, 1
        %s2296 = scalar_lea.sflag [#allocation5], %s2295
        %s2297 = sand.u32 %s141, 1
        %s2298 = smul.addr %s2297, 8
        %s2299 = scalar_lea.vmem [#allocation9], %s2298
        // Predicated region
        $region53: #{tpu_custom_call.1} parent=39 // pred_check
          %p2300 = pneg %p151
        $region54: #{tpu_custom_call.1} parent=39 // pred_check_branch
          %2302 = sbr.rel (%p2300) target = $region56
        $region55: #{tpu_custom_call.1} parent=39 // pred_region
          %s2304 = ssub.s32 128, 128
          %2305 = vsyncadd %s2296, %s2304
          %s2306 = smul.addr %s23, 2
          %s2307 = smul.addr %s2306, 64
          %s2308 = scalar_lea.hbm %s5, %s2307
          %s2310 = sshll.u32 %s2299, 4
          %s2311 = int_to_ptr.vmem [resolvable:$true] %s2310
          %2313 = dma.vmem_to_hbm [thread:$0]  %s2311, 128, %s2308, %s2296
        $region56: #{tpu_custom_call.1} parent=39 // pred_fallthru
          _
      $region40: #{tpu_custom_call.1} parent=5 // pred_fallthru
        _
      %p2314 = scmp.le.s32.totalorder 2, %s18
      // Predicated region
      $region57: #{tpu_custom_call.1} parent=5 // pred_check
        %p2315 = pneg %p2314
      $region58: #{tpu_custom_call.1} parent=5 // pred_check_branch
        %2317 = sbr.rel (%p2315) target = $region60
      $region59: #{tpu_custom_call.1} parent=5 // pred_region
        %s2318 = ssub.s32 %s18, 2
        // Predicated region
        $region61: #{tpu_custom_call.1} parent=59 // pred_check
          %p2319 = pneg %p157
        $region62: #{tpu_custom_call.1} parent=59 // pred_check_branch
          %2321 = sbr.rel (%p2319) target = $region64
        $region63: #{tpu_custom_call.1} parent=59 // pred_region
          %s2322 = sand.u32 %s142, 1
          %s2323 = scalar_lea.sflag [#allocation5], %s2322
          %s2324 = sand.u32 %s142, 1
          %s2325 = smul.addr %s2324, 8
          %s2326 = scalar_lea.vmem [#allocation9], %s2325
          %2327 = dma.done %s2323, 128
        $region64: #{tpu_custom_call.1} parent=59 // pred_fallthru
          _
      $region60: #{tpu_custom_call.1} parent=5 // pred_fallthru
        _
    $region6: #{tpu_custom_call.1} parent=1 // loop_footer
      %s22 = sadd.s32 1, %s18
    $region7: #{tpu_custom_call.1} parent=1 // loop_footer_branch
      %17 = sbr.rel target = $region3
    $region8: #{tpu_custom_call.1} parent=1 // loop_exit
      _
    %2328 = vsyncpa [#allocation4], 1
    %s2329 = scalar_lea.sflag [#allocation4], 1
    %2330 = vsyncpa %s2329, 1
    %2331 = vsyncpa [#allocation7], 1
    %2332 = vsyncpa [#allocation5], 1
    %s2333 = scalar_lea.sflag [#allocation5], 1
    %2334 = vsyncpa %s2333, 1

</llo_original>
